<compile_context>
chip_gen: v7x
topology: tpu7x:2x2x1
jax: 0.10.0
libtpu: 0.0.40
codegen_flags: <defaults>
</compile_context>

<pallas_src>
import math
import functools

import jax
import jax.numpy as jnp
from jax import lax
from jax.experimental import pallas as pl
from jax.experimental.pallas import tpu as pltpu

EPS = 1e-5  # torch.nn.LayerNorm default


def _layer_norm(x):
    # Non-affine LayerNorm over the last axis (gamma/beta are folded into the
    # following linear layer); biased variance like torch.nn.LayerNorm.
    mu = jnp.mean(x, axis=-1, keepdims=True)
    var = jnp.mean((x - mu) ** 2, axis=-1, keepdims=True)
    return (x - mu) * lax.rsqrt(var + EPS)


def encoder_stack_kernel(x_ref, bias_ref,
                         wqkv_ref, bqkv_ref, wo_ref, bo_ref,
                         w1_ref, b1_ref, w2_ref, b2_ref,
                         fg_ref, fb_ref,
                         o_ref, *, num_heads):
    """One (batch-block, layer) grid step of the full pre-norm encoder stack.

    The residual stream for this batch block is kept in o_ref's VMEM block,
    which is resident across the (innermost, 'arbitrary') layer axis.
    """
    l = pl.program_id(1)
    num_layers = pl.num_programs(1)

    # Initialize the resident residual stream from the embedded input.
    @pl.when(l == 0)
    def _():
        o_ref[...] = x_ref[...]

    xb = o_ref[...]                       # (Bb, S, D) f32 residual stream
    Bb, S, D = xb.shape
    dh = D // num_heads
    R = Bb * S
    scale = 1.0 / math.sqrt(dh)

    x = xb.reshape(R, D)                  # fold batch block into matmul rows

    # Additive padding bias (0 keep / -1e9 pad), broadcast ONCE per layer
    # (hoisted out of the statically-unrolled head loop).
    bias_full = jnp.broadcast_to(bias_ref[...], (Bb, S, S))

    # ---------------- pre-norm 1 + multi-head self-attention ----------------
    # norm1's gamma/beta are folded into wqkv/bqkv at init.
    nx = _layer_norm(x)
    qkv = jnp.dot(nx.astype(jnp.bfloat16), wqkv_ref[0],
                  preferred_element_type=jnp.float32) + bqkv_ref[0]   # (R, 3D)

    attn = jnp.zeros((R, D), jnp.float32)
    for h in range(num_heads):
        qh = qkv[:, h * dh:(h + 1) * dh].reshape(Bb, S, dh).astype(jnp.bfloat16)
        kh = qkv[:, D + h * dh:D + (h + 1) * dh].reshape(Bb, S, dh).astype(jnp.bfloat16)
        vh = qkv[:, 2 * D + h * dh:2 * D + (h + 1) * dh].reshape(Bb, S, dh).astype(jnp.bfloat16)

        # Batched (over batch block) scores; contract the head dim.
        s = jnp.einsum('bqd,bkd->bqk', qh, kh,
                       preferred_element_type=jnp.float32) * scale + bias_full
        s = s - jnp.max(s, axis=-1, keepdims=True)
        p = jnp.exp(s)
        p = p * pl.reciprocal(jnp.sum(p, axis=-1, keepdims=True), approx=True)

        ctx = jnp.einsum('bqk,bkd->bqd', p.astype(jnp.bfloat16), vh,
                         preferred_element_type=jnp.float32)          # (Bb,S,dh)

        # Per-head output-projection contribution: lane-dense (R, D) output,
        # no context scratch / masked sub-lane stores.
        attn = attn + jnp.dot(ctx.reshape(R, dh).astype(jnp.bfloat16),
                              wo_ref[0, h * dh:(h + 1) * dh, :],
                              preferred_element_type=jnp.float32)

    attn = attn + bo_ref[0]
    x = x + attn                          # dropout1 == identity in eval mode

    # ---------------------- pre-norm 2 + feed-forward ------------------------
    # norm2's gamma/beta are folded into w1/b1 at init.
    nx2 = _layer_norm(x)
    h1 = jnp.dot(nx2.astype(jnp.bfloat16), w1_ref[0],
                 preferred_element_type=jnp.float32) + b1_ref[0]
    h1 = jnp.maximum(h1, 0.0)             # ReLU in FeedForwardBlock
    ff = jnp.dot(h1.astype(jnp.bfloat16), w2_ref[0],
                 preferred_element_type=jnp.float32) + b2_ref[0]
    x = x + ff                            # dropout2 == identity in eval mode

    # Write back the residual stream; fold the final LayerNorm (pre_norm=True)
    # into the last layer iteration.
    @pl.when(l < num_layers - 1)
    def _():
        o_ref[...] = x.reshape(Bb, S, D)

    @pl.when(l == num_layers - 1)
    def _():
        y = _layer_norm(x) * fg_ref[...] + fb_ref[...]
        o_ref[...] = y.reshape(Bb, S, D)


# ----------------------- parameter construction (deterministic) -----------------------

def sinusoidal_pe(max_len, d):
    pos = jnp.arange(max_len, dtype=jnp.float32)[:, None]
    div = jnp.exp(jnp.arange(0, d, 2, dtype=jnp.float32) * (-math.log(10000.0) / d))
    pe = jnp.zeros((max_len, d), jnp.float32)
    pe = pe.at[:, 0::2].set(jnp.sin(pos * div))
    pe = pe.at[:, 1::2].set(jnp.cos(pos * div))
    return pe


def _fold_ln_affine(gamma, beta, w, b):
    """Fold LayerNorm affine into the following linear layer (exact):
       (LN(x)*g + b0) @ W + b  ==  LN(x) @ (g[:,None]*W) + (b0 @ W + b).
       Shapes: gamma/beta (L, D); w (L, D, N); b (L, N)."""
    w_f = gamma[:, :, None] * w
    b_f = b + jnp.einsum('ld,ldn->ln', beta, w)
    return w_f, b_f


def init_params(key, vocab_size, embed_dim, ff_dim, num_layers, max_seq_len):
    """Per-layer weights are stacked along a leading (L, ...) axis.
    Matmul weights are stored as (in, out) in bf16 (f32 accumulation in-kernel).
    norm1/norm2 affines are folded into wqkv/bqkv and w1/b1."""
    D, FF, L = embed_dim, ff_dim, num_layers

    def dense(k, shape):
        return 0.02 * jax.random.normal(k, shape, jnp.float32)

    k_emb, kq, kk, kv, ko, k1, k2 = jax.random.split(key, 7)
    wq = dense(kq, (L, D, D))
    wk = dense(kk, (L, D, D))
    wv = dense(kv, (L, D, D))
    wqkv = jnp.concatenate([wq, wk, wv], axis=-1)          # (L, D, 3D)
    bqkv = jnp.zeros((L, 3 * D), jnp.float32)
    w1 = dense(k1, (L, D, FF))
    b1 = jnp.zeros((L, FF), jnp.float32)

    # LayerNorm affine params (torch init: gamma=1, beta=0) -> fold into linears.
    g1 = jnp.ones((L, D), jnp.float32)
    be1 = jnp.zeros((L, D), jnp.float32)
    g2 = jnp.ones((L, D), jnp.float32)
    be2 = jnp.zeros((L, D), jnp.float32)
    wqkv, bqkv = _fold_ln_affine(g1, be1, wqkv, bqkv)
    w1, b1 = _fold_ln_affine(g2, be2, w1, b1)

    params = {
        "embedding": dense(k_emb, (vocab_size, D)),
        "pe": sinusoidal_pe(max_seq_len, D),
        "wqkv": wqkv.astype(jnp.bfloat16),                 # (L, D, 3D)
        "bqkv": bqkv.reshape(L, 1, 3 * D),
        "wo": dense(ko, (L, D, D)).astype(jnp.bfloat16),
        "bo": jnp.zeros((L, 1, D), jnp.float32),
        "w1": w1.astype(jnp.bfloat16),                     # (L, D, FF)
        "b1": b1.reshape(L, 1, FF),
        "w2": dense(k2, (L, FF, D)).astype(jnp.bfloat16),
        "b2": jnp.zeros((L, 1, D), jnp.float32),
        "final_g": jnp.ones((1, D), jnp.float32),
        "final_b": jnp.zeros((1, D), jnp.float32),
    }
    return params


# ----------------------------------- forward pass -----------------------------------

def _pick_block_b(B, target=8):
    """Largest divisor of B that is <= target (batch elements per grid step)."""
    bb = min(B, target)
    while B % bb:
        bb -= 1
    return bb


def _vmem_limit_bytes(bb, S, D, FF, weights):
    """Explicit scoped-VMEM budget: double-buffered I/O blocks + per-layer
    weight slabs + in-kernel intermediates, with generous headroom; capped at
    64 MiB so it is valid on every target (v7x per-TC VMEM)."""
    r = bb * S
    io_blocks = 2 * (bb * S * D * 4 + bb * S * 4) + 2 * bb * S * D * 4
    w_blocks = 2 * sum(int(math.prod(w.shape[1:])) * w.dtype.itemsize for w in weights)
    inter = 4 * (r * 3 * D + 3 * bb * S * S + r * FF + 6 * r * D)
    est = 2 * (io_blocks + w_blocks + inter)
    return int(min(64 * 2 ** 20, max(32 * 2 ** 20, est)))


def transformer_encoder_forward(params, input_ids, src_padding_mask, num_heads,
                                block_b=None):
    """input_ids: (B, S) int32; src_padding_mask: (B, 1, 1, S) float (1=keep, 0=pad)."""
    B, S = input_ids.shape
    D = params["embedding"].shape[1]
    L = params["wqkv"].shape[0]
    FF = params["w1"].shape[2]
    assert D % num_heads == 0

    if block_b is None:
        block_b = _pick_block_b(B)
    nb = B // block_b

    # glue (not hot path): embedding gather + sinusoidal positional encoding add;
    # dropout after embeddings == identity in eval mode.
    x = params["embedding"][input_ids] + params["pe"][:S][None, :, :]
    # precompute additive attention bias once: 0 for keep, -1e9 for pad
    bias = (src_padding_mask.reshape(B, 1, S).astype(jnp.float32) - 1.0) * 1e9

    order = ("wqkv", "bqkv", "wo", "bo", "w1", "b1", "w2", "b2")
    weights = [params[n] for n in order]

    def layer_spec(w):
        # stacked (L, a, b) weight: take layer l's slab each inner grid step
        return pl.BlockSpec((1,) + tuple(w.shape[1:]), lambda b, l: (l, 0, 0))

    in_specs = ([pl.BlockSpec((block_b, S, D), lambda b, l: (b, 0, 0)),
                 pl.BlockSpec((block_b, 1, S), lambda b, l: (b, 0, 0))]
                + [layer_spec(w) for w in weights]
                + [pl.BlockSpec((1, D), lambda b, l: (0, 0)),
                   pl.BlockSpec((1, D), lambda b, l: (0, 0))])

    return pl.pallas_call(
        functools.partial(encoder_stack_kernel, num_heads=num_heads),
        out_shape=jax.ShapeDtypeStruct((B, S, D), jnp.float32),
        grid=(nb, L),
        in_specs=in_specs,
        out_specs=pl.BlockSpec((block_b, S, D), lambda b, l: (b, 0, 0)),
        compiler_params=pltpu.CompilerParams(
            dimension_semantics=("parallel", "arbitrary"),
            vmem_limit_bytes=_vmem_limit_bytes(block_b, S, D, FF, weights)),
    )(x, bias, *weights, params["final_g"], params["final_b"])
    # TODO(synk): gradient checkpointing / dropout are training-only; inference path only.


if __name__ == "__main__":
    VOCAB, EMBED, HEADS, FF, LAYERS, MAX_SEQ = 100, 32, 4, 64, 2, 16
    B, S = 2, 8
    # NOTE: demo shapes are far below the (8,128) vreg tile / MXU dims; tune
    # block_b and the TODO tilings with realistic S/D/FF before benchmarking.

    key = jax.random.PRNGKey(0)
    pkey, ikey = jax.random.split(key)
    params = init_params(pkey, VOCAB, EMBED, FF, LAYERS, MAX_SEQ)

    input_ids = jax.random.randint(ikey, (B, S), 0, VOCAB, dtype=jnp.int32)
    # padding mask [B, 1, 1, S]: last two positions of batch element 1 are padding
    mask = jnp.ones((B, 1, 1, S), jnp.float32).at[1, :, :, -2:].set(0.0)

    out = transformer_encoder_forward(params, input_ids, mask, HEADS)
    out = jax.block_until_ready(out)
    assert out.shape == (B, S, EMBED) and out.dtype == jnp.float32
    assert bool(jnp.all(jnp.isfinite(out)))
    print("KERNEL_OK")
</pallas_src>

<mosaic_0001>
module attributes {stable_mosaic.version = 11 : i64} {
  func.func @encoder_stack_kernel(%arg0: i32, %arg1: i32, %arg2: memref<2x8x32xf32, #tpu.memory_space<vmem>>, %arg3: memref<2x1x8xf32, #tpu.memory_space<vmem>>, %arg4: memref<1x32x96xbf16, #tpu.memory_space<vmem>>, %arg5: memref<1x1x96xf32, #tpu.memory_space<vmem>>, %arg6: memref<1x32x32xbf16, #tpu.memory_space<vmem>>, %arg7: memref<1x1x32xf32, #tpu.memory_space<vmem>>, %arg8: memref<1x32x64xbf16, #tpu.memory_space<vmem>>, %arg9: memref<1x1x64xf32, #tpu.memory_space<vmem>>, %arg10: memref<1x64x32xbf16, #tpu.memory_space<vmem>>, %arg11: memref<1x1x32xf32, #tpu.memory_space<vmem>>, %arg12: memref<1x32xf32, #tpu.memory_space<vmem>>, %arg13: memref<1x32xf32, #tpu.memory_space<vmem>>, %arg14: memref<2x8x32xf32, #tpu.memory_space<vmem>>) attributes {dimension_semantics = [#tpu.dimension_semantics<parallel>, #tpu.dimension_semantics<arbitrary>], iteration_bounds = array<i64: 1, 2>, scalar_prefetch = 0 : i64, scratch_operands = 0 : i64, tpu.core_type = #tpu.core_type<tc>, window_params = [{transform_indices = @transform_0, window_bounds = array<i64: 2, 8, 32>}, {transform_indices = @transform_1, window_bounds = array<i64: 2, 1, 8>}, {transform_indices = @transform_2, window_bounds = array<i64: 1, 32, 96>}, {transform_indices = @transform_3, window_bounds = array<i64: 1, 1, 96>}, {transform_indices = @transform_4, window_bounds = array<i64: 1, 32, 32>}, {transform_indices = @transform_5, window_bounds = array<i64: 1, 1, 32>}, {transform_indices = @transform_6, window_bounds = array<i64: 1, 32, 64>}, {transform_indices = @transform_7, window_bounds = array<i64: 1, 1, 64>}, {transform_indices = @transform_8, window_bounds = array<i64: 1, 64, 32>}, {transform_indices = @transform_9, window_bounds = array<i64: 1, 1, 32>}, {pipeline_mode = #tpu.pipeline_mode<synchronous>, transform_indices = @transform_10, window_bounds = array<i64: 1, 32>}, {pipeline_mode = #tpu.pipeline_mode<synchronous>, transform_indices = @transform_11, window_bounds = array<i64: 1, 32>}, {transform_indices = @transform_12, window_bounds = array<i64: 2, 8, 32>}]} {
    %c0_i32 = arith.constant 0 : i32
    %0 = arith.cmpi eq, %arg1, %c0_i32 : i32
    %1 = arith.extui %0 : i1 to i32
    %c0_i32_0 = arith.constant 0 : i32
    %2 = arith.cmpi ne, %1, %c0_i32_0 : i32
    scf.if %2 {
      %c0_77 = arith.constant 0 : index
      %c0_78 = arith.constant 0 : index
      %c0_79 = arith.constant 0 : index
      %207 = vector.load %arg2[%c0_77, %c0_78, %c0_79] : memref<2x8x32xf32, #tpu.memory_space<vmem>>, vector<2x8x32xf32>
      %c0_80 = arith.constant 0 : index
      %c0_81 = arith.constant 0 : index
      %c0_82 = arith.constant 0 : index
      %208 = vector.load %arg14[%c0_80, %c0_81, %c0_82] : memref<2x8x32xf32, #tpu.memory_space<vmem>>, vector<2x8x32xf32>
      tpu.vector_store %arg14[%c0_80, %c0_81, %c0_82], %207 {strides = array<i32>} : memref<2x8x32xf32, #tpu.memory_space<vmem>>, vector<2x8x32xf32>,
    } else {
    }
    %c0 = arith.constant 0 : index
    %c0_1 = arith.constant 0 : index
    %c0_2 = arith.constant 0 : index
    %3 = vector.load %arg14[%c0, %c0_1, %c0_2] : memref<2x8x32xf32, #tpu.memory_space<vmem>>, vector<2x8x32xf32>
    %4 = vector.shape_cast %3 : vector<2x8x32xf32> to vector<16x32xf32>
    %c0_3 = arith.constant 0 : index
    %c0_4 = arith.constant 0 : index
    %c0_5 = arith.constant 0 : index
    %5 = vector.load %arg3[%c0_3, %c0_4, %c0_5] : memref<2x1x8xf32, #tpu.memory_space<vmem>>, vector<2x1x8xf32>
    %6 = vector.shape_cast %5 : vector<2x1x8xf32> to vector<2x1x8xf32>
    %7 = vector.broadcast %6 : vector<2x1x8xf32> to vector<2x8x8xf32>
    %cst = arith.constant dense<0.000000e+00> : vector<16xf32>
    %8 = vector.multi_reduction <add>, %4, %cst [1] : vector<16x32xf32> to vector<16xf32>
    %9 = vector.shape_cast %8 : vector<16xf32> to vector<16x1xf32>
    %cst_6 = arith.constant 3.200000e+01 : f32
    %10 = vector.broadcast %cst_6 : f32 to vector<16x1xf32>
    %11 = arith.divf %9, %10 : vector<16x1xf32>
    %12 = vector.broadcast %11 : vector<16x1xf32> to vector<16x32xf32>
    %13 = arith.subf %4, %12 : vector<16x32xf32>
    %14 = arith.mulf %13, %13 : vector<16x32xf32>
    %cst_7 = arith.constant dense<0.000000e+00> : vector<16xf32>
    %15 = vector.multi_reduction <add>, %14, %cst_7 [1] : vector<16x32xf32> to vector<16xf32>
    %16 = vector.shape_cast %15 : vector<16xf32> to vector<16x1xf32>
    %cst_8 = arith.constant 3.200000e+01 : f32
    %17 = vector.broadcast %cst_8 : f32 to vector<16x1xf32>
    %18 = arith.divf %16, %17 : vector<16x1xf32>
    %19 = vector.broadcast %11 : vector<16x1xf32> to vector<16x32xf32>
    %20 = arith.subf %4, %19 : vector<16x32xf32>
    %cst_9 = arith.constant 9.99999974E-6 : f32
    %21 = vector.broadcast %cst_9 : f32 to vector<16x1xf32>
    %22 = arith.addf %18, %21 : vector<16x1xf32>
    %23 = math.rsqrt %22 : vector<16x1xf32>
    %24 = vector.broadcast %23 : vector<16x1xf32> to vector<16x32xf32>
    %25 = arith.mulf %20, %24 : vector<16x32xf32>
    %26 = arith.truncf %25 : vector<16x32xf32> to vector<16x32xbf16>
    %c0_10 = arith.constant 0 : index
    %c0_11 = arith.constant 0 : index
    %c0_12 = arith.constant 0 : index
    %27 = vector.load %arg4[%c0_10, %c0_11, %c0_12] : memref<1x32x96xbf16, #tpu.memory_space<vmem>>, vector<1x32x96xbf16>
    %28 = vector.shape_cast %27 : vector<1x32x96xbf16> to vector<32x96xbf16>
    %cst_13 = arith.constant dense<0.000000e+00> : vector<16x96xf32>
    %29 = tpu.matmul %26, %28, %cst_13 {dimension_numbers = #tpu.dot_dimension_numbers<[1], [0], [0], [1], [0, 0, 1, 1], [], []>} : vector<16x32xbf16>, vector<32x96xbf16>, vector<16x96xf32> -> vector<16x96xf32>
    %c0_14 = arith.constant 0 : index
    %c0_15 = arith.constant 0 : index
    %c0_16 = arith.constant 0 : index
    %30 = vector.load %arg5[%c0_14, %c0_15, %c0_16] : memref<1x1x96xf32, #tpu.memory_space<vmem>>, vector<1x1x96xf32>
    %31 = vector.shape_cast %30 : vector<1x1x96xf32> to vector<1x96xf32>
    %32 = vector.broadcast %31 : vector<1x96xf32> to vector<16x96xf32>
    %33 = arith.addf %29, %32 : vector<16x96xf32>
    %cst_17 = arith.constant 0.000000e+00 : f32
    %34 = vector.broadcast %cst_17 : f32 to vector<16x32xf32>
    %35 = vector.extract_strided_slice %33 {offsets = [0, 0], sizes = [16, 8], strides = [1, 1]} : vector<16x96xf32> to vector<16x8xf32>
    %36 = vector.shape_cast %35 : vector<16x8xf32> to vector<2x8x8xf32>
    %37 = arith.truncf %36 : vector<2x8x8xf32> to vector<2x8x8xbf16>
    %38 = vector.extract_strided_slice %33 {offsets = [0, 32], sizes = [16, 8], strides = [1, 1]} : vector<16x96xf32> to vector<16x8xf32>
    %39 = vector.shape_cast %38 : vector<16x8xf32> to vector<2x8x8xf32>
    %40 = arith.truncf %39 : vector<2x8x8xf32> to vector<2x8x8xbf16>
    %41 = vector.extract_strided_slice %33 {offsets = [0, 64], sizes = [16, 8], strides = [1, 1]} : vector<16x96xf32> to vector<16x8xf32>
    %42 = vector.shape_cast %41 : vector<16x8xf32> to vector<2x8x8xf32>
    %43 = arith.truncf %42 : vector<2x8x8xf32> to vector<2x8x8xbf16>
    "tpu.trace_start"() <{level = 10 : i32, message = "bqd,bkd->bqk"}> : () -> ()
    %cst_18 = arith.constant dense<0.000000e+00> : vector<2x8x8xf32>
    %44 = tpu.matmul %37, %40, %cst_18 {dimension_numbers = #tpu.dot_dimension_numbers<[2], [2], [1], [1], [0, 0, 0, 1, 1, 1], [0], [0]>} : vector<2x8x8xbf16>, vector<2x8x8xbf16>, vector<2x8x8xf32> -> vector<2x8x8xf32>
    "tpu.trace_stop"() : () -> ()
    %cst_19 = arith.constant 0.353553385 : f32
    %45 = vector.broadcast %cst_19 : f32 to vector<2x8x8xf32>
    %46 = arith.mulf %44, %45 : vector<2x8x8xf32>
    %47 = arith.addf %46, %7 : vector<2x8x8xf32>
    %cst_20 = arith.constant dense<0xFF800000> : vector<2x8xf32>
    %48 = vector.multi_reduction <maximumf>, %47, %cst_20 [2] : vector<2x8x8xf32> to vector<2x8xf32>
    %49 = vector.shape_cast %48 : vector<2x8xf32> to vector<2x8x1xf32>
    %50 = vector.broadcast %49 : vector<2x8x1xf32> to vector<2x8x8xf32>
    %51 = arith.subf %47, %50 : vector<2x8x8xf32>
    %52 = math.exp %51 : vector<2x8x8xf32>
    %cst_21 = arith.constant dense<0.000000e+00> : vector<2x8xf32>
    %53 = vector.multi_reduction <add>, %52, %cst_21 [2] : vector<2x8x8xf32> to vector<2x8xf32>
    %54 = vector.shape_cast %53 : vector<2x8xf32> to vector<2x8x1xf32>
    %55 = tpu.reciprocal %54 {approx = true} : vector<2x8x1xf32> -> vector<2x8x1xf32>
    %56 = vector.broadcast %55 : vector<2x8x1xf32> to vector<2x8x8xf32>
    %57 = arith.mulf %52, %56 : vector<2x8x8xf32>
    %58 = arith.truncf %57 : vector<2x8x8xf32> to vector<2x8x8xbf16>
    "tpu.trace_start"() <{level = 10 : i32, message = "bqk,bkd->bqd"}> : () -> ()
    %cst_22 = arith.constant dense<0.000000e+00> : vector<2x8x8xf32>
    %59 = tpu.matmul %58, %43, %cst_22 {dimension_numbers = #tpu.dot_dimension_numbers<[2], [1], [1], [2], [0, 0, 0, 1, 1, 2], [0], [0]>} : vector<2x8x8xbf16>, vector<2x8x8xbf16>, vector<2x8x8xf32> -> vector<2x8x8xf32>
    "tpu.trace_stop"() : () -> ()
    %60 = vector.shape_cast %59 : vector<2x8x8xf32> to vector<16x8xf32>
    %61 = arith.truncf %60 : vector<16x8xf32> to vector<16x8xbf16>
    %c0_23 = arith.constant 0 : index
    %c0_24 = arith.constant 0 : index
    %c0_25 = arith.constant 0 : index
    %62 = vector.load %arg6[%c0_23, %c0_24, %c0_25] : memref<1x32x32xbf16, #tpu.memory_space<vmem>>, vector<1x8x32xbf16>
    %63 = vector.shape_cast %62 : vector<1x8x32xbf16> to vector<8x32xbf16>
    %cst_26 = arith.constant dense<0.000000e+00> : vector<16x32xf32>
    %64 = tpu.matmul %61, %63, %cst_26 {dimension_numbers = #tpu.dot_dimension_numbers<[1], [0], [0], [1], [0, 0, 1, 1], [], []>} : vector<16x8xbf16>, vector<8x32xbf16>, vector<16x32xf32> -> vector<16x32xf32>
    %65 = arith.addf %34, %64 : vector<16x32xf32>
    %66 = vector.extract_strided_slice %33 {offsets = [0, 8], sizes = [16, 8], strides = [1, 1]} : vector<16x96xf32> to vector<16x8xf32>
    %67 = vector.shape_cast %66 : vector<16x8xf32> to vector<2x8x8xf32>
    %68 = arith.truncf %67 : vector<2x8x8xf32> to vector<2x8x8xbf16>
    %69 = vector.extract_strided_slice %33 {offsets = [0, 40], sizes = [16, 8], strides = [1, 1]} : vector<16x96xf32> to vector<16x8xf32>
    %70 = vector.shape_cast %69 : vector<16x8xf32> to vector<2x8x8xf32>
    %71 = arith.truncf %70 : vector<2x8x8xf32> to vector<2x8x8xbf16>
    %72 = vector.extract_strided_slice %33 {offsets = [0, 72], sizes = [16, 8], strides = [1, 1]} : vector<16x96xf32> to vector<16x8xf32>
    %73 = vector.shape_cast %72 : vector<16x8xf32> to vector<2x8x8xf32>
    %74 = arith.truncf %73 : vector<2x8x8xf32> to vector<2x8x8xbf16>
    "tpu.trace_start"() <{level = 10 : i32, message = "bqd,bkd->bqk"}> : () -> ()
    %cst_27 = arith.constant dense<0.000000e+00> : vector<2x8x8xf32>
    %75 = tpu.matmul %68, %71, %cst_27 {dimension_numbers = #tpu.dot_dimension_numbers<[2], [2], [1], [1], [0, 0, 0, 1, 1, 1], [0], [0]>} : vector<2x8x8xbf16>, vector<2x8x8xbf16>, vector<2x8x8xf32> -> vector<2x8x8xf32>
    "tpu.trace_stop"() : () -> ()
    %cst_28 = arith.constant 0.353553385 : f32
    %76 = vector.broadcast %cst_28 : f32 to vector<2x8x8xf32>
    %77 = arith.mulf %75, %76 : vector<2x8x8xf32>
    %78 = arith.addf %77, %7 : vector<2x8x8xf32>
    %cst_29 = arith.constant dense<0xFF800000> : vector<2x8xf32>
    %79 = vector.multi_reduction <maximumf>, %78, %cst_29 [2] : vector<2x8x8xf32> to vector<2x8xf32>
    %80 = vector.shape_cast %79 : vector<2x8xf32> to vector<2x8x1xf32>
    %81 = vector.broadcast %80 : vector<2x8x1xf32> to vector<2x8x8xf32>
    %82 = arith.subf %78, %81 : vector<2x8x8xf32>
    %83 = math.exp %82 : vector<2x8x8xf32>
    %cst_30 = arith.constant dense<0.000000e+00> : vector<2x8xf32>
    %84 = vector.multi_reduction <add>, %83, %cst_30 [2] : vector<2x8x8xf32> to vector<2x8xf32>
    %85 = vector.shape_cast %84 : vector<2x8xf32> to vector<2x8x1xf32>
    %86 = tpu.reciprocal %85 {approx = true} : vector<2x8x1xf32> -> vector<2x8x1xf32>
    %87 = vector.broadcast %86 : vector<2x8x1xf32> to vector<2x8x8xf32>
    %88 = arith.mulf %83, %87 : vector<2x8x8xf32>
    %89 = arith.truncf %88 : vector<2x8x8xf32> to vector<2x8x8xbf16>
    "tpu.trace_start"() <{level = 10 : i32, message = "bqk,bkd->bqd"}> : () -> ()
    %cst_31 = arith.constant dense<0.000000e+00> : vector<2x8x8xf32>
    %90 = tpu.matmul %89, %74, %cst_31 {dimension_numbers = #tpu.dot_dimension_numbers<[2], [1], [1], [2], [0, 0, 0, 1, 1, 2], [0], [0]>} : vector<2x8x8xbf16>, vector<2x8x8xbf16>, vector<2x8x8xf32> -> vector<2x8x8xf32>
    "tpu.trace_stop"() : () -> ()
    %91 = vector.shape_cast %90 : vector<2x8x8xf32> to vector<16x8xf32>
    %92 = arith.truncf %91 : vector<16x8xf32> to vector<16x8xbf16>
    %c0_32 = arith.constant 0 : index
    %c8 = arith.constant 8 : index
    %c0_33 = arith.constant 0 : index
    %93 = vector.load %arg6[%c0_32, %c8, %c0_33] : memref<1x32x32xbf16, #tpu.memory_space<vmem>>, vector<1x8x32xbf16>
    %94 = vector.shape_cast %93 : vector<1x8x32xbf16> to vector<8x32xbf16>
    %cst_34 = arith.constant dense<0.000000e+00> : vector<16x32xf32>
    %95 = tpu.matmul %92, %94, %cst_34 {dimension_numbers = #tpu.dot_dimension_numbers<[1], [0], [0], [1], [0, 0, 1, 1], [], []>} : vector<16x8xbf16>, vector<8x32xbf16>, vector<16x32xf32> -> vector<16x32xf32>
    %96 = arith.addf %65, %95 : vector<16x32xf32>
    %97 = vector.extract_strided_slice %33 {offsets = [0, 16], sizes = [16, 8], strides = [1, 1]} : vector<16x96xf32> to vector<16x8xf32>
    %98 = vector.shape_cast %97 : vector<16x8xf32> to vector<2x8x8xf32>
    %99 = arith.truncf %98 : vector<2x8x8xf32> to vector<2x8x8xbf16>
    %100 = vector.extract_strided_slice %33 {offsets = [0, 48], sizes = [16, 8], strides = [1, 1]} : vector<16x96xf32> to vector<16x8xf32>
    %101 = vector.shape_cast %100 : vector<16x8xf32> to vector<2x8x8xf32>
    %102 = arith.truncf %101 : vector<2x8x8xf32> to vector<2x8x8xbf16>
    %103 = vector.extract_strided_slice %33 {offsets = [0, 80], sizes = [16, 8], strides = [1, 1]} : vector<16x96xf32> to vector<16x8xf32>
    %104 = vector.shape_cast %103 : vector<16x8xf32> to vector<2x8x8xf32>
    %105 = arith.truncf %104 : vector<2x8x8xf32> to vector<2x8x8xbf16>
    "tpu.trace_start"() <{level = 10 : i32, message = "bqd,bkd->bqk"}> : () -> ()
    %cst_35 = arith.constant dense<0.000000e+00> : vector<2x8x8xf32>
    %106 = tpu.matmul %99, %102, %cst_35 {dimension_numbers = #tpu.dot_dimension_numbers<[2], [2], [1], [1], [0, 0, 0, 1, 1, 1], [0], [0]>} : vector<2x8x8xbf16>, vector<2x8x8xbf16>, vector<2x8x8xf32> -> vector<2x8x8xf32>
    "tpu.trace_stop"() : () -> ()
    %cst_36 = arith.constant 0.353553385 : f32
    %107 = vector.broadcast %cst_36 : f32 to vector<2x8x8xf32>
    %108 = arith.mulf %106, %107 : vector<2x8x8xf32>
    %109 = arith.addf %108, %7 : vector<2x8x8xf32>
    %cst_37 = arith.constant dense<0xFF800000> : vector<2x8xf32>
    %110 = vector.multi_reduction <maximumf>, %109, %cst_37 [2] : vector<2x8x8xf32> to vector<2x8xf32>
    %111 = vector.shape_cast %110 : vector<2x8xf32> to vector<2x8x1xf32>
    %112 = vector.broadcast %111 : vector<2x8x1xf32> to vector<2x8x8xf32>
    %113 = arith.subf %109, %112 : vector<2x8x8xf32>
    %114 = math.exp %113 : vector<2x8x8xf32>
    %cst_38 = arith.constant dense<0.000000e+00> : vector<2x8xf32>
    %115 = vector.multi_reduction <add>, %114, %cst_38 [2] : vector<2x8x8xf32> to vector<2x8xf32>
    %116 = vector.shape_cast %115 : vector<2x8xf32> to vector<2x8x1xf32>
    %117 = tpu.reciprocal %116 {approx = true} : vector<2x8x1xf32> -> vector<2x8x1xf32>
    %118 = vector.broadcast %117 : vector<2x8x1xf32> to vector<2x8x8xf32>
    %119 = arith.mulf %114, %118 : vector<2x8x8xf32>
    %120 = arith.truncf %119 : vector<2x8x8xf32> to vector<2x8x8xbf16>
    "tpu.trace_start"() <{level = 10 : i32, message = "bqk,bkd->bqd"}> : () -> ()
    %cst_39 = arith.constant dense<0.000000e+00> : vector<2x8x8xf32>
    %121 = tpu.matmul %120, %105, %cst_39 {dimension_numbers = #tpu.dot_dimension_numbers<[2], [1], [1], [2], [0, 0, 0, 1, 1, 2], [0], [0]>} : vector<2x8x8xbf16>, vector<2x8x8xbf16>, vector<2x8x8xf32> -> vector<2x8x8xf32>
    "tpu.trace_stop"() : () -> ()
    %122 = vector.shape_cast %121 : vector<2x8x8xf32> to vector<16x8xf32>
    %123 = arith.truncf %122 : vector<16x8xf32> to vector<16x8xbf16>
    %c0_40 = arith.constant 0 : index
    %c16 = arith.constant 16 : index
    %c0_41 = arith.constant 0 : index
    %124 = vector.load %arg6[%c0_40, %c16, %c0_41] : memref<1x32x32xbf16, #tpu.memory_space<vmem>>, vector<1x8x32xbf16>
    %125 = vector.shape_cast %124 : vector<1x8x32xbf16> to vector<8x32xbf16>
    %cst_42 = arith.constant dense<0.000000e+00> : vector<16x32xf32>
    %126 = tpu.matmul %123, %125, %cst_42 {dimension_numbers = #tpu.dot_dimension_numbers<[1], [0], [0], [1], [0, 0, 1, 1], [], []>} : vector<16x8xbf16>, vector<8x32xbf16>, vector<16x32xf32> -> vector<16x32xf32>
    %127 = arith.addf %96, %126 : vector<16x32xf32>
    %128 = vector.extract_strided_slice %33 {offsets = [0, 24], sizes = [16, 8], strides = [1, 1]} : vector<16x96xf32> to vector<16x8xf32>
    %129 = vector.shape_cast %128 : vector<16x8xf32> to vector<2x8x8xf32>
    %130 = arith.truncf %129 : vector<2x8x8xf32> to vector<2x8x8xbf16>
    %131 = vector.extract_strided_slice %33 {offsets = [0, 56], sizes = [16, 8], strides = [1, 1]} : vector<16x96xf32> to vector<16x8xf32>
    %132 = vector.shape_cast %131 : vector<16x8xf32> to vector<2x8x8xf32>
    %133 = arith.truncf %132 : vector<2x8x8xf32> to vector<2x8x8xbf16>
    %134 = vector.extract_strided_slice %33 {offsets = [0, 88], sizes = [16, 8], strides = [1, 1]} : vector<16x96xf32> to vector<16x8xf32>
    %135 = vector.shape_cast %134 : vector<16x8xf32> to vector<2x8x8xf32>
    %136 = arith.truncf %135 : vector<2x8x8xf32> to vector<2x8x8xbf16>
    "tpu.trace_start"() <{level = 10 : i32, message = "bqd,bkd->bqk"}> : () -> ()
    %cst_43 = arith.constant dense<0.000000e+00> : vector<2x8x8xf32>
    %137 = tpu.matmul %130, %133, %cst_43 {dimension_numbers = #tpu.dot_dimension_numbers<[2], [2], [1], [1], [0, 0, 0, 1, 1, 1], [0], [0]>} : vector<2x8x8xbf16>, vector<2x8x8xbf16>, vector<2x8x8xf32> -> vector<2x8x8xf32>
    "tpu.trace_stop"() : () -> ()
    %cst_44 = arith.constant 0.353553385 : f32
    %138 = vector.broadcast %cst_44 : f32 to vector<2x8x8xf32>
    %139 = arith.mulf %137, %138 : vector<2x8x8xf32>
    %140 = arith.addf %139, %7 : vector<2x8x8xf32>
    %cst_45 = arith.constant dense<0xFF800000> : vector<2x8xf32>
    %141 = vector.multi_reduction <maximumf>, %140, %cst_45 [2] : vector<2x8x8xf32> to vector<2x8xf32>
    %142 = vector.shape_cast %141 : vector<2x8xf32> to vector<2x8x1xf32>
    %143 = vector.broadcast %142 : vector<2x8x1xf32> to vector<2x8x8xf32>
    %144 = arith.subf %140, %143 : vector<2x8x8xf32>
    %145 = math.exp %144 : vector<2x8x8xf32>
    %cst_46 = arith.constant dense<0.000000e+00> : vector<2x8xf32>
    %146 = vector.multi_reduction <add>, %145, %cst_46 [2] : vector<2x8x8xf32> to vector<2x8xf32>
    %147 = vector.shape_cast %146 : vector<2x8xf32> to vector<2x8x1xf32>
    %148 = tpu.reciprocal %147 {approx = true} : vector<2x8x1xf32> -> vector<2x8x1xf32>
    %149 = vector.broadcast %148 : vector<2x8x1xf32> to vector<2x8x8xf32>
    %150 = arith.mulf %145, %149 : vector<2x8x8xf32>
    %151 = arith.truncf %150 : vector<2x8x8xf32> to vector<2x8x8xbf16>
    "tpu.trace_start"() <{level = 10 : i32, message = "bqk,bkd->bqd"}> : () -> ()
    %cst_47 = arith.constant dense<0.000000e+00> : vector<2x8x8xf32>
    %152 = tpu.matmul %151, %136, %cst_47 {dimension_numbers = #tpu.dot_dimension_numbers<[2], [1], [1], [2], [0, 0, 0, 1, 1, 2], [0], [0]>} : vector<2x8x8xbf16>, vector<2x8x8xbf16>, vector<2x8x8xf32> -> vector<2x8x8xf32>
    "tpu.trace_stop"() : () -> ()
    %153 = vector.shape_cast %152 : vector<2x8x8xf32> to vector<16x8xf32>
    %154 = arith.truncf %153 : vector<16x8xf32> to vector<16x8xbf16>
    %c0_48 = arith.constant 0 : index
    %c24 = arith.constant 24 : index
    %c0_49 = arith.constant 0 : index
    %155 = vector.load %arg6[%c0_48, %c24, %c0_49] : memref<1x32x32xbf16, #tpu.memory_space<vmem>>, vector<1x8x32xbf16>
    %156 = vector.shape_cast %155 : vector<1x8x32xbf16> to vector<8x32xbf16>
    %cst_50 = arith.constant dense<0.000000e+00> : vector<16x32xf32>
    %157 = tpu.matmul %154, %156, %cst_50 {dimension_numbers = #tpu.dot_dimension_numbers<[1], [0], [0], [1], [0, 0, 1, 1], [], []>} : vector<16x8xbf16>, vector<8x32xbf16>, vector<16x32xf32> -> vector<16x32xf32>
    %158 = arith.addf %127, %157 : vector<16x32xf32>
    %c0_51 = arith.constant 0 : index
    %c0_52 = arith.constant 0 : index
    %c0_53 = arith.constant 0 : index
    %159 = vector.load %arg7[%c0_51, %c0_52, %c0_53] : memref<1x1x32xf32, #tpu.memory_space<vmem>>, vector<1x1x32xf32>
    %160 = vector.shape_cast %159 : vector<1x1x32xf32> to vector<1x32xf32>
    %161 = vector.broadcast %160 : vector<1x32xf32> to vector<16x32xf32>
    %162 = arith.addf %158, %161 : vector<16x32xf32>
    %163 = arith.addf %4, %162 : vector<16x32xf32>
    %cst_54 = arith.constant dense<0.000000e+00> : vector<16xf32>
    %164 = vector.multi_reduction <add>, %163, %cst_54 [1] : vector<16x32xf32> to vector<16xf32>
    %165 = vector.shape_cast %164 : vector<16xf32> to vector<16x1xf32>
    %cst_55 = arith.constant 3.200000e+01 : f32
    %166 = vector.broadcast %cst_55 : f32 to vector<16x1xf32>
    %167 = arith.divf %165, %166 : vector<16x1xf32>
    %168 = vector.broadcast %167 : vector<16x1xf32> to vector<16x32xf32>
    %169 = arith.subf %163, %168 : vector<16x32xf32>
    %170 = arith.mulf %169, %169 : vector<16x32xf32>
    %cst_56 = arith.constant dense<0.000000e+00> : vector<16xf32>
    %171 = vector.multi_reduction <add>, %170, %cst_56 [1] : vector<16x32xf32> to vector<16xf32>
    %172 = vector.shape_cast %171 : vector<16xf32> to vector<16x1xf32>
    %cst_57 = arith.constant 3.200000e+01 : f32
    %173 = vector.broadcast %cst_57 : f32 to vector<16x1xf32>
    %174 = arith.divf %172, %173 : vector<16x1xf32>
    %175 = vector.broadcast %167 : vector<16x1xf32> to vector<16x32xf32>
    %176 = arith.subf %163, %175 : vector<16x32xf32>
    %cst_58 = arith.constant 9.99999974E-6 : f32
    %177 = vector.broadcast %cst_58 : f32 to vector<16x1xf32>
    %178 = arith.addf %174, %177 : vector<16x1xf32>
    %179 = math.rsqrt %178 : vector<16x1xf32>
    %180 = vector.broadcast %179 : vector<16x1xf32> to vector<16x32xf32>
    %181 = arith.mulf %176, %180 : vector<16x32xf32>
    %182 = arith.truncf %181 : vector<16x32xf32> to vector<16x32xbf16>
    %c0_59 = arith.constant 0 : index
    %c0_60 = arith.constant 0 : index
    %c0_61 = arith.constant 0 : index
    %183 = vector.load %arg8[%c0_59, %c0_60, %c0_61] : memref<1x32x64xbf16, #tpu.memory_space<vmem>>, vector<1x32x64xbf16>
    %184 = vector.shape_cast %183 : vector<1x32x64xbf16> to vector<32x64xbf16>
    %cst_62 = arith.constant dense<0.000000e+00> : vector<16x64xf32>
    %185 = tpu.matmul %182, %184, %cst_62 {dimension_numbers = #tpu.dot_dimension_numbers<[1], [0], [0], [1], [0, 0, 1, 1], [], []>} : vector<16x32xbf16>, vector<32x64xbf16>, vector<16x64xf32> -> vector<16x64xf32>
    %c0_63 = arith.constant 0 : index
    %c0_64 = arith.constant 0 : index
    %c0_65 = arith.constant 0 : index
    %186 = vector.load %arg9[%c0_63, %c0_64, %c0_65] : memref<1x1x64xf32, #tpu.memory_space<vmem>>, vector<1x1x64xf32>
    %187 = vector.shape_cast %186 : vector<1x1x64xf32> to vector<1x64xf32>
    %188 = vector.broadcast %187 : vector<1x64xf32> to vector<16x64xf32>
    %189 = arith.addf %185, %188 : vector<16x64xf32>
    %cst_66 = arith.constant 0.000000e+00 : f32
    %190 = vector.broadcast %cst_66 : f32 to vector<16x64xf32>
    %191 = arith.maximumf %189, %190 : vector<16x64xf32>
    %192 = arith.truncf %191 : vector<16x64xf32> to vector<16x64xbf16>
    %c0_67 = arith.constant 0 : index
    %c0_68 = arith.constant 0 : index
    %c0_69 = arith.constant 0 : index
    %193 = vector.load %arg10[%c0_67, %c0_68, %c0_69] : memref<1x64x32xbf16, #tpu.memory_space<vmem>>, vector<1x64x32xbf16>
    %194 = vector.shape_cast %193 : vector<1x64x32xbf16> to vector<64x32xbf16>
    %cst_70 = arith.constant dense<0.000000e+00> : vector<16x32xf32>
    %195 = tpu.matmul %192, %194, %cst_70 {dimension_numbers = #tpu.dot_dimension_numbers<[1], [0], [0], [1], [0, 0, 1, 1], [], []>} : vector<16x64xbf16>, vector<64x32xbf16>, vector<16x32xf32> -> vector<16x32xf32>
    %c0_71 = arith.constant 0 : index
    %c0_72 = arith.constant 0 : index
    %c0_73 = arith.constant 0 : index
    %196 = vector.load %arg11[%c0_71, %c0_72, %c0_73] : memref<1x1x32xf32, #tpu.memory_space<vmem>>, vector<1x1x32xf32>
    %197 = vector.shape_cast %196 : vector<1x1x32xf32> to vector<1x32xf32>
    %198 = vector.broadcast %197 : vector<1x32xf32> to vector<16x32xf32>
    %199 = arith.addf %195, %198 : vector<16x32xf32>
    %200 = arith.addf %163, %199 : vector<16x32xf32>
    %c1_i32 = arith.constant 1 : i32
    %201 = arith.cmpi slt, %arg1, %c1_i32 : i32
    %202 = arith.extui %201 : i1 to i32
    %c0_i32_74 = arith.constant 0 : i32
    %203 = arith.cmpi ne, %202, %c0_i32_74 : i32
    scf.if %203 {
      %207 = vector.shape_cast %200 : vector<16x32xf32> to vector<2x8x32xf32>
      %c0_77 = arith.constant 0 : index
      %c0_78 = arith.constant 0 : index
      %c0_79 = arith.constant 0 : index
      %208 = vector.load %arg14[%c0_77, %c0_78, %c0_79] : memref<2x8x32xf32, #tpu.memory_space<vmem>>, vector<2x8x32xf32>
      tpu.vector_store %arg14[%c0_77, %c0_78, %c0_79], %207 {strides = array<i32>} : memref<2x8x32xf32, #tpu.memory_space<vmem>>, vector<2x8x32xf32>,
    } else {
    }
    %c1_i32_75 = arith.constant 1 : i32
    %204 = arith.cmpi eq, %arg1, %c1_i32_75 : i32
    %205 = arith.extui %204 : i1 to i32
    %c0_i32_76 = arith.constant 0 : i32
    %206 = arith.cmpi ne, %205, %c0_i32_76 : i32
    scf.if %206 {
      %cst_77 = arith.constant dense<0.000000e+00> : vector<16xf32>
      %207 = vector.multi_reduction <add>, %200, %cst_77 [1] : vector<16x32xf32> to vector<16xf32>
      %208 = vector.shape_cast %207 : vector<16xf32> to vector<16x1xf32>
      %cst_78 = arith.constant 3.200000e+01 : f32
      %209 = vector.broadcast %cst_78 : f32 to vector<16x1xf32>
      %210 = arith.divf %208, %209 : vector<16x1xf32>
      %211 = vector.broadcast %210 : vector<16x1xf32> to vector<16x32xf32>
      %212 = arith.subf %200, %211 : vector<16x32xf32>
      %213 = arith.mulf %212, %212 : vector<16x32xf32>
      %cst_79 = arith.constant dense<0.000000e+00> : vector<16xf32>
      %214 = vector.multi_reduction <add>, %213, %cst_79 [1] : vector<16x32xf32> to vector<16xf32>
      %215 = vector.shape_cast %214 : vector<16xf32> to vector<16x1xf32>
      %cst_80 = arith.constant 3.200000e+01 : f32
      %216 = vector.broadcast %cst_80 : f32 to vector<16x1xf32>
      %217 = arith.divf %215, %216 : vector<16x1xf32>
      %218 = vector.broadcast %210 : vector<16x1xf32> to vector<16x32xf32>
      %219 = arith.subf %200, %218 : vector<16x32xf32>
      %cst_81 = arith.constant 9.99999974E-6 : f32
      %220 = vector.broadcast %cst_81 : f32 to vector<16x1xf32>
      %221 = arith.addf %217, %220 : vector<16x1xf32>
      %222 = math.rsqrt %221 : vector<16x1xf32>
      %223 = vector.broadcast %222 : vector<16x1xf32> to vector<16x32xf32>
      %224 = arith.mulf %219, %223 : vector<16x32xf32>
      %c0_82 = arith.constant 0 : index
      %c0_83 = arith.constant 0 : index
      %225 = vector.load %arg12[%c0_82, %c0_83] : memref<1x32xf32, #tpu.memory_space<vmem>>, vector<1x32xf32>
      %226 = vector.broadcast %225 : vector<1x32xf32> to vector<16x32xf32>
      %227 = arith.mulf %224, %226 : vector<16x32xf32>
      %c0_84 = arith.constant 0 : index
      %c0_85 = arith.constant 0 : index
      %228 = vector.load %arg13[%c0_84, %c0_85] : memref<1x32xf32, #tpu.memory_space<vmem>>, vector<1x32xf32>
      %229 = vector.broadcast %228 : vector<1x32xf32> to vector<16x32xf32>
      %230 = arith.addf %227, %229 : vector<16x32xf32>
      %231 = vector.shape_cast %230 : vector<16x32xf32> to vector<2x8x32xf32>
      %c0_86 = arith.constant 0 : index
      %c0_87 = arith.constant 0 : index
      %c0_88 = arith.constant 0 : index
      %232 = vector.load %arg14[%c0_86, %c0_87, %c0_88] : memref<2x8x32xf32, #tpu.memory_space<vmem>>, vector<2x8x32xf32>
      tpu.vector_store %arg14[%c0_86, %c0_87, %c0_88], %231 {strides = array<i32>} : memref<2x8x32xf32, #tpu.memory_space<vmem>>, vector<2x8x32xf32>,
    } else {
    }
    return
  }
  func.func @transform_0(%arg0: i32, %arg1: i32) -> (i32, i32, i32) {
    %c0_i32 = arith.constant 0 : i32
    %c0_i32_0 = arith.constant 0 : i32
    %c0_i32_1 = arith.constant 0 : i32
    return %arg0, %c0_i32, %c0_i32_0 : i32, i32, i32
  }
  func.func @transform_1(%arg0: i32, %arg1: i32) -> (i32, i32, i32) {
    %c0_i32 = arith.constant 0 : i32
    %c0_i32_0 = arith.constant 0 : i32
    %c0_i32_1 = arith.constant 0 : i32
    return %arg0, %c0_i32, %c0_i32_0 : i32, i32, i32
  }
  func.func @transform_2(%arg0: i32, %arg1: i32) -> (i32, i32, i32) {
    %c0_i32 = arith.constant 0 : i32
    %c0_i32_0 = arith.constant 0 : i32
    %c0_i32_1 = arith.constant 0 : i32
    return %arg1, %c0_i32, %c0_i32_0 : i32, i32, i32
  }
  func.func @transform_3(%arg0: i32, %arg1: i32) -> (i32, i32, i32) {
    %c0_i32 = arith.constant 0 : i32
    %c0_i32_0 = arith.constant 0 : i32
    %c0_i32_1 = arith.constant 0 : i32
    return %arg1, %c0_i32, %c0_i32_0 : i32, i32, i32
  }
  func.func @transform_4(%arg0: i32, %arg1: i32) -> (i32, i32, i32) {
    %c0_i32 = arith.constant 0 : i32
    %c0_i32_0 = arith.constant 0 : i32
    %c0_i32_1 = arith.constant 0 : i32
    return %arg1, %c0_i32, %c0_i32_0 : i32, i32, i32
  }
  func.func @transform_5(%arg0: i32, %arg1: i32) -> (i32, i32, i32) {
    %c0_i32 = arith.constant 0 : i32
    %c0_i32_0 = arith.constant 0 : i32
    %c0_i32_1 = arith.constant 0 : i32
    return %arg1, %c0_i32, %c0_i32_0 : i32, i32, i32
  }
  func.func @transform_6(%arg0: i32, %arg1: i32) -> (i32, i32, i32) {
    %c0_i32 = arith.constant 0 : i32
    %c0_i32_0 = arith.constant 0 : i32
    %c0_i32_1 = arith.constant 0 : i32
    return %arg1, %c0_i32, %c0_i32_0 : i32, i32, i32
  }
  func.func @transform_7(%arg0: i32, %arg1: i32) -> (i32, i32, i32) {
    %c0_i32 = arith.constant 0 : i32
    %c0_i32_0 = arith.constant 0 : i32
    %c0_i32_1 = arith.constant 0 : i32
    return %arg1, %c0_i32, %c0_i32_0 : i32, i32, i32
  }
  func.func @transform_8(%arg0: i32, %arg1: i32) -> (i32, i32, i32) {
    %c0_i32 = arith.constant 0 : i32
    %c0_i32_0 = arith.constant 0 : i32
    %c0_i32_1 = arith.constant 0 : i32
    return %arg1, %c0_i32, %c0_i32_0 : i32, i32, i32
  }
  func.func @transform_9(%arg0: i32, %arg1: i32) -> (i32, i32, i32) {
    %c0_i32 = arith.constant 0 : i32
    %c0_i32_0 = arith.constant 0 : i32
    %c0_i32_1 = arith.constant 0 : i32
    return %arg1, %c0_i32, %c0_i32_0 : i32, i32, i32
  }
  func.func @transform_10(%arg0: i32, %arg1: i32) -> (i32, i32) {
    %c0_i32 = arith.constant 0 : i32
    %c0_i32_0 = arith.constant 0 : i32
    %c0_i32_1 = arith.constant 0 : i32
    return %c0_i32, %c0_i32_0 : i32, i32
  }
  func.func @transform_11(%arg0: i32, %arg1: i32) -> (i32, i32) {
    %c0_i32 = arith.constant 0 : i32
    %c0_i32_0 = arith.constant 0 : i32
    %c0_i32_1 = arith.constant 0 : i32
    return %c0_i32, %c0_i32_0 : i32, i32
  }
  func.func @transform_12(%arg0: i32, %arg1: i32) -> (i32, i32, i32) {
    %c0_i32 = arith.constant 0 : i32
    %c0_i32_0 = arith.constant 0 : i32
    %c0_i32_1 = arith.constant 0 : i32
    return %arg0, %c0_i32, %c0_i32_0 : i32, i32, i32
  }
}

</mosaic_0001>

<llo_original>
// kernel: tpu_custom_call.1
$region0: #{tpu_custom_call.1}
  #allocation0 [shape = 'u32[]', space=smem, size = 0x4, offset = 0x4, fixed_abs, tag = 'smem constant byte address 0x4 - core index']
  #allocation1 [shape = 'u32[144,128]{1,0:T(1,128)}', space=vmem, size = 0x12000, scoped, tag = 'internal scratch']
  %s0 = inlined_call_operand.hbm [shape: f32[2,8,32], index: 0, kind: input, shape index: {}]
  %s1 = inlined_call_operand.vmem [shape: f32[2,1,8], index: 1, kind: input, shape index: {}]
  %s2 = inlined_call_operand.vmem [shape: bf16[2,32,96], index: 2, kind: input, shape index: {}]
  %s3 = inlined_call_operand.vmem [shape: f32[2,1,96], index: 3, kind: input, shape index: {}]
  %s4 = inlined_call_operand.vmem [shape: bf16[2,32,32], index: 4, kind: input, shape index: {}]
  %s5 = inlined_call_operand.vmem [shape: f32[2,1,32], index: 5, kind: input, shape index: {}]
  %s6 = inlined_call_operand.vmem [shape: bf16[2,32,64], index: 6, kind: input, shape index: {}]
  %s7 = inlined_call_operand.vmem [shape: f32[2,1,64], index: 7, kind: input, shape index: {}]
  %s8 = inlined_call_operand.vmem [shape: bf16[2,64,32], index: 8, kind: input, shape index: {}]
  %s9 = inlined_call_operand.vmem [shape: f32[2,1,32], index: 9, kind: input, shape index: {}]
  %s10 = inlined_call_operand.vmem [shape: f32[1,32], index: 10, kind: input, shape index: {}]
  %s11 = inlined_call_operand.vmem [shape: f32[1,32], index: 11, kind: input, shape index: {}]
  %s12 = inlined_call_operand.hbm [shape: f32[2,8,32], index: 12, kind: output, shape index: {}]
  %s13 = sld [smem:[#allocation0]]
  $region97: #{tpu_custom_call.1} parent=0
    _
  %s15 = ssub.s32 1, %s13
  %s16 = scalar_select 0, %s15, %s13
  $region1: #{tpu_custom_call.1} parent=0
    #allocation2 [shape = 'u8[8192]{0}', space=vmem, size = 0x2000, scoped, tag = 'input window, operand 0, single buffered']
    #allocation3 [shape = 's32[2]{0}', space=sflag, size = 0x8, scoped, tag = 'scoped memory for tpu_custom_call.1']
    #allocation4 [shape = 's32[2]{0}', space=sflag, size = 0x8, scoped, tag = 'scoped memory for tpu_custom_call.1']
    #allocation5 [shape = 'u8[8192]{0}', space=vmem, size = 0x2000, scoped, tag = 'output window, operand 0, single buffered']
    %17 = vsyncpa [#allocation3], 0
    %18 = vsyncpa [#allocation4], 0
    loop: start=0, step=1, limit=4
    $region2: #{tpu_custom_call.1} parent=1 // loop_pre_header
      _
    $region3: #{tpu_custom_call.1} parent=1 // loop_header
      %s20 = sphi 0, %s24
      %p21 = scmp.ge.s32.totalorder %s20, 4
      %s27 = sphi 0, %s39
      %s28 = sphi 0, %s35
      %s29 = sphi 0, %s27
      %s30 = sphi 0, %s28
      %s31 = sphi 0, %s29
      %s32 = sphi 0, %s30
      %s42 = sphi 0, %s44
      %s45 = sphi 0, %s42
      %s46 = sphi 0, %s45
      %s62 = sphi 0, %s46
      %s68 = sphi 0, %s70
      %s71 = sphi 0, %s68
      %s72 = sphi 0, %s71
      %s88 = sphi 0, %s72
      %s94 = sphi 0, %s96
      %s97 = sphi 0, %s94
      %s98 = sphi 0, %s97
      %s114 = sphi 0, %s98
      %s120 = sphi 0, %s122
      %s123 = sphi 0, %s120
      %s124 = sphi 0, %s123
      %s140 = sphi 0, %s124
      %s146 = sphi 0, %s148
      %s149 = sphi 0, %s146
      %s150 = sphi 0, %s149
      %s166 = sphi 0, %s150
      %s172 = sphi 0, %s174
      %s175 = sphi 0, %s172
      %s176 = sphi 0, %s175
      %s192 = sphi 0, %s176
      %s198 = sphi 0, %s200
      %s201 = sphi 0, %s198
      %s202 = sphi 0, %s201
      %s218 = sphi 0, %s202
      %s224 = sphi 0, %s226
      %s227 = sphi 0, %s224
      %s228 = sphi 0, %s227
      %s244 = sphi 0, %s228
      %s250 = sphi 0, %s252
      %s253 = sphi 0, %s250
      %s254 = sphi 0, %s253
      %s270 = sphi 0, %s254
      %s276 = sphi 0, %s278
      %s279 = sphi 0, %s276
      %s280 = sphi 0, %s279
      %s296 = sphi 0, %s280
      %s300 = sphi 0, %s300
      %s302 = sphi 0, %s300
      %s303 = sphi 0, %s302
      %s317 = sphi 0, %s303
      %s321 = sphi 0, %s321
      %s323 = sphi 0, %s321
      %s324 = sphi 0, %s323
      %s338 = sphi 0, %s324
      %s344 = sphi 0, %s346
      %s347 = sphi 0, %s344
      %s348 = sphi 0, %s347
      %s364 = sphi 0, %s348
    $region4: #{tpu_custom_call.1} parent=1 // loop_header_branch
      %23 = sbr.rel (%p21) target = $region8
    $region5: #{tpu_custom_call.1} parent=1 // loop_body
      %s25 = ssub.s32 %s20, 1
      %s26 = ssub.s32 %s20, 2
      %s33 = sadd.s32 1, %s28
      %p34 = scmp.ge.s32.totalorder %s33, 2
      %s35 = scalar_select %p34, 0, %s33
      %s36 = sadd.s32 1, %s27
      %s37 = scalar_select %p34, %s36, %s27
      %p38 = scmp.ge.s32.totalorder %s37, 1
      %s39 = scalar_select %p38, 0, %s37
      %s40 = ssub.s32 %s27, %s39
      %p41 = scmp.eq.s32.totalorder %s40, 0
      %s43 = sadd.s32 %s42, 1
      %s44 = scalar_select %p41, %s42, %s43
      %p47 = pneg %p41
      %p48 = scmp.eq.s32.totalorder %s20, 1
      %p49 = por %p47, %p48
      %p50 = scmp.ne.s32.totalorder %s42, %s45
      %p51 = scmp.eq.s32.totalorder %s20, 0
      %p52 = por %p50, %p51
      %p53 = scmp.ne.s32.totalorder %s42, %s45
      %p54 = scmp.eq.s32.totalorder %s25, 1
      %p55 = por %p53, %p54
      %p56 = scmp.ne.s32.totalorder %s45, %s46
      %p57 = scmp.eq.s32.totalorder %s25, 0
      %p58 = por %p56, %p57
      %p59 = scmp.ne.s32.totalorder %s45, %s46
      %p60 = scmp.eq.s32.totalorder %s26, 1
      %p61 = por %p59, %p60
      %p63 = scmp.ne.s32.totalorder %s46, %s62
      %p64 = scmp.eq.s32.totalorder %s26, 0
      %p65 = por %p63, %p64
      %s66 = ssub.s32 %s27, %s39
      %p67 = scmp.eq.s32.totalorder %s66, 0
      %s69 = sadd.s32 %s68, 1
      %s70 = scalar_select %p67, %s68, %s69
      %p73 = pneg %p67
      %p74 = scmp.eq.s32.totalorder %s20, 1
      %p75 = por %p73, %p74
      %p76 = scmp.ne.s32.totalorder %s68, %s71
      %p77 = scmp.eq.s32.totalorder %s20, 0
      %p78 = por %p76, %p77
      %p79 = scmp.ne.s32.totalorder %s68, %s71
      %p80 = scmp.eq.s32.totalorder %s25, 1
      %p81 = por %p79, %p80
      %p82 = scmp.ne.s32.totalorder %s71, %s72
      %p83 = scmp.eq.s32.totalorder %s25, 0
      %p84 = por %p82, %p83
      %p85 = scmp.ne.s32.totalorder %s71, %s72
      %p86 = scmp.eq.s32.totalorder %s26, 1
      %p87 = por %p85, %p86
      %p89 = scmp.ne.s32.totalorder %s72, %s88
      %p90 = scmp.eq.s32.totalorder %s26, 0
      %p91 = por %p89, %p90
      %s92 = ssub.s32 %s28, %s35
      %p93 = scmp.eq.s32.totalorder %s92, 0
      %s95 = sadd.s32 %s94, 1
      %s96 = scalar_select %p93, %s94, %s95
      %p99 = pneg %p93
      %p100 = scmp.eq.s32.totalorder %s20, 1
      %p101 = por %p99, %p100
      %p102 = scmp.ne.s32.totalorder %s94, %s97
      %p103 = scmp.eq.s32.totalorder %s20, 0
      %p104 = por %p102, %p103
      %p105 = scmp.ne.s32.totalorder %s94, %s97
      %p106 = scmp.eq.s32.totalorder %s25, 1
      %p107 = por %p105, %p106
      %p108 = scmp.ne.s32.totalorder %s97, %s98
      %p109 = scmp.eq.s32.totalorder %s25, 0
      %p110 = por %p108, %p109
      %p111 = scmp.ne.s32.totalorder %s97, %s98
      %p112 = scmp.eq.s32.totalorder %s26, 1
      %p113 = por %p111, %p112
      %p115 = scmp.ne.s32.totalorder %s98, %s114
      %p116 = scmp.eq.s32.totalorder %s26, 0
      %p117 = por %p115, %p116
      %s118 = ssub.s32 %s28, %s35
      %p119 = scmp.eq.s32.totalorder %s118, 0
      %s121 = sadd.s32 %s120, 1
      %s122 = scalar_select %p119, %s120, %s121
      %p125 = pneg %p119
      %p126 = scmp.eq.s32.totalorder %s20, 1
      %p127 = por %p125, %p126
      %p128 = scmp.ne.s32.totalorder %s120, %s123
      %p129 = scmp.eq.s32.totalorder %s20, 0
      %p130 = por %p128, %p129
      %p131 = scmp.ne.s32.totalorder %s120, %s123
      %p132 = scmp.eq.s32.totalorder %s25, 1
      %p133 = por %p131, %p132
      %p134 = scmp.ne.s32.totalorder %s123, %s124
      %p135 = scmp.eq.s32.totalorder %s25, 0
      %p136 = por %p134, %p135
      %p137 = scmp.ne.s32.totalorder %s123, %s124
      %p138 = scmp.eq.s32.totalorder %s26, 1
      %p139 = por %p137, %p138
      %p141 = scmp.ne.s32.totalorder %s124, %s140
      %p142 = scmp.eq.s32.totalorder %s26, 0
      %p143 = por %p141, %p142
      %s144 = ssub.s32 %s28, %s35
      %p145 = scmp.eq.s32.totalorder %s144, 0
      %s147 = sadd.s32 %s146, 1
      %s148 = scalar_select %p145, %s146, %s147
      %p151 = pneg %p145
      %p152 = scmp.eq.s32.totalorder %s20, 1
      %p153 = por %p151, %p152
      %p154 = scmp.ne.s32.totalorder %s146, %s149
      %p155 = scmp.eq.s32.totalorder %s20, 0
      %p156 = por %p154, %p155
      %p157 = scmp.ne.s32.totalorder %s146, %s149
      %p158 = scmp.eq.s32.totalorder %s25, 1
      %p159 = por %p157, %p158
      %p160 = scmp.ne.s32.totalorder %s149, %s150
      %p161 = scmp.eq.s32.totalorder %s25, 0
      %p162 = por %p160, %p161
      %p163 = scmp.ne.s32.totalorder %s149, %s150
      %p164 = scmp.eq.s32.totalorder %s26, 1
      %p165 = por %p163, %p164
      %p167 = scmp.ne.s32.totalorder %s150, %s166
      %p168 = scmp.eq.s32.totalorder %s26, 0
      %p169 = por %p167, %p168
      %s170 = ssub.s32 %s28, %s35
      %p171 = scmp.eq.s32.totalorder %s170, 0
      %s173 = sadd.s32 %s172, 1
      %s174 = scalar_select %p171, %s172, %s173
      %p177 = pneg %p171
      %p178 = scmp.eq.s32.totalorder %s20, 1
      %p179 = por %p177, %p178
      %p180 = scmp.ne.s32.totalorder %s172, %s175
      %p181 = scmp.eq.s32.totalorder %s20, 0
      %p182 = por %p180, %p181
      %p183 = scmp.ne.s32.totalorder %s172, %s175
      %p184 = scmp.eq.s32.totalorder %s25, 1
      %p185 = por %p183, %p184
      %p186 = scmp.ne.s32.totalorder %s175, %s176
      %p187 = scmp.eq.s32.totalorder %s25, 0
      %p188 = por %p186, %p187
      %p189 = scmp.ne.s32.totalorder %s175, %s176
      %p190 = scmp.eq.s32.totalorder %s26, 1
      %p191 = por %p189, %p190
      %p193 = scmp.ne.s32.totalorder %s176, %s192
      %p194 = scmp.eq.s32.totalorder %s26, 0
      %p195 = por %p193, %p194
      %s196 = ssub.s32 %s28, %s35
      %p197 = scmp.eq.s32.totalorder %s196, 0
      %s199 = sadd.s32 %s198, 1
      %s200 = scalar_select %p197, %s198, %s199
      %p203 = pneg %p197
      %p204 = scmp.eq.s32.totalorder %s20, 1
      %p205 = por %p203, %p204
      %p206 = scmp.ne.s32.totalorder %s198, %s201
      %p207 = scmp.eq.s32.totalorder %s20, 0
      %p208 = por %p206, %p207
      %p209 = scmp.ne.s32.totalorder %s198, %s201
      %p210 = scmp.eq.s32.totalorder %s25, 1
      %p211 = por %p209, %p210
      %p212 = scmp.ne.s32.totalorder %s201, %s202
      %p213 = scmp.eq.s32.totalorder %s25, 0
      %p214 = por %p212, %p213
      %p215 = scmp.ne.s32.totalorder %s201, %s202
      %p216 = scmp.eq.s32.totalorder %s26, 1
      %p217 = por %p215, %p216
      %p219 = scmp.ne.s32.totalorder %s202, %s218
      %p220 = scmp.eq.s32.totalorder %s26, 0
      %p221 = por %p219, %p220
      %s222 = ssub.s32 %s28, %s35
      %p223 = scmp.eq.s32.totalorder %s222, 0
      %s225 = sadd.s32 %s224, 1
      %s226 = scalar_select %p223, %s224, %s225
      %p229 = pneg %p223
      %p230 = scmp.eq.s32.totalorder %s20, 1
      %p231 = por %p229, %p230
      %p232 = scmp.ne.s32.totalorder %s224, %s227
      %p233 = scmp.eq.s32.totalorder %s20, 0
      %p234 = por %p232, %p233
      %p235 = scmp.ne.s32.totalorder %s224, %s227
      %p236 = scmp.eq.s32.totalorder %s25, 1
      %p237 = por %p235, %p236
      %p238 = scmp.ne.s32.totalorder %s227, %s228
      %p239 = scmp.eq.s32.totalorder %s25, 0
      %p240 = por %p238, %p239
      %p241 = scmp.ne.s32.totalorder %s227, %s228
      %p242 = scmp.eq.s32.totalorder %s26, 1
      %p243 = por %p241, %p242
      %p245 = scmp.ne.s32.totalorder %s228, %s244
      %p246 = scmp.eq.s32.totalorder %s26, 0
      %p247 = por %p245, %p246
      %s248 = ssub.s32 %s28, %s35
      %p249 = scmp.eq.s32.totalorder %s248, 0
      %s251 = sadd.s32 %s250, 1
      %s252 = scalar_select %p249, %s250, %s251
      %p255 = pneg %p249
      %p256 = scmp.eq.s32.totalorder %s20, 1
      %p257 = por %p255, %p256
      %p258 = scmp.ne.s32.totalorder %s250, %s253
      %p259 = scmp.eq.s32.totalorder %s20, 0
      %p260 = por %p258, %p259
      %p261 = scmp.ne.s32.totalorder %s250, %s253
      %p262 = scmp.eq.s32.totalorder %s25, 1
      %p263 = por %p261, %p262
      %p264 = scmp.ne.s32.totalorder %s253, %s254
      %p265 = scmp.eq.s32.totalorder %s25, 0
      %p266 = por %p264, %p265
      %p267 = scmp.ne.s32.totalorder %s253, %s254
      %p268 = scmp.eq.s32.totalorder %s26, 1
      %p269 = por %p267, %p268
      %p271 = scmp.ne.s32.totalorder %s254, %s270
      %p272 = scmp.eq.s32.totalorder %s26, 0
      %p273 = por %p271, %p272
      %s274 = ssub.s32 %s28, %s35
      %p275 = scmp.eq.s32.totalorder %s274, 0
      %s277 = sadd.s32 %s276, 1
      %s278 = scalar_select %p275, %s276, %s277
      %p281 = pneg %p275
      %p282 = scmp.eq.s32.totalorder %s20, 1
      %p283 = por %p281, %p282
      %p284 = scmp.ne.s32.totalorder %s276, %s279
      %p285 = scmp.eq.s32.totalorder %s20, 0
      %p286 = por %p284, %p285
      %p287 = scmp.ne.s32.totalorder %s276, %s279
      %p288 = scmp.eq.s32.totalorder %s25, 1
      %p289 = por %p287, %p288
      %p290 = scmp.ne.s32.totalorder %s279, %s280
      %p291 = scmp.eq.s32.totalorder %s25, 0
      %p292 = por %p290, %p291
      %p293 = scmp.ne.s32.totalorder %s279, %s280
      %p294 = scmp.eq.s32.totalorder %s26, 1
      %p295 = por %p293, %p294
      %p297 = scmp.ne.s32.totalorder %s280, %s296
      %p298 = scmp.eq.s32.totalorder %s26, 0
      %p299 = por %p297, %p298
      %s301 = sadd.s32 %s300, 1
      %p304 = scmp.eq.s32.totalorder %s20, 1
      %p305 = scmp.ne.s32.totalorder %s300, %s302
      %p306 = scmp.eq.s32.totalorder %s20, 0
      %p307 = por %p305, %p306
      %p308 = scmp.ne.s32.totalorder %s300, %s302
      %p309 = scmp.eq.s32.totalorder %s25, 1
      %p310 = por %p308, %p309
      %p311 = scmp.ne.s32.totalorder %s302, %s303
      %p312 = scmp.eq.s32.totalorder %s25, 0
      %p313 = por %p311, %p312
      %p314 = scmp.ne.s32.totalorder %s302, %s303
      %p315 = scmp.eq.s32.totalorder %s26, 1
      %p316 = por %p314, %p315
      %p318 = scmp.ne.s32.totalorder %s303, %s317
      %p319 = scmp.eq.s32.totalorder %s26, 0
      %p320 = por %p318, %p319
      %s322 = sadd.s32 %s321, 1
      %p325 = scmp.eq.s32.totalorder %s20, 1
      %p326 = scmp.ne.s32.totalorder %s321, %s323
      %p327 = scmp.eq.s32.totalorder %s20, 0
      %p328 = por %p326, %p327
      %p329 = scmp.ne.s32.totalorder %s321, %s323
      %p330 = scmp.eq.s32.totalorder %s25, 1
      %p331 = por %p329, %p330
      %p332 = scmp.ne.s32.totalorder %s323, %s324
      %p333 = scmp.eq.s32.totalorder %s25, 0
      %p334 = por %p332, %p333
      %p335 = scmp.ne.s32.totalorder %s323, %s324
      %p336 = scmp.eq.s32.totalorder %s26, 1
      %p337 = por %p335, %p336
      %p339 = scmp.ne.s32.totalorder %s324, %s338
      %p340 = scmp.eq.s32.totalorder %s26, 0
      %p341 = por %p339, %p340
      %s342 = ssub.s32 %s27, %s39
      %p343 = scmp.eq.s32.totalorder %s342, 0
      %s345 = sadd.s32 %s344, 1
      %s346 = scalar_select %p343, %s344, %s345
      %p349 = pneg %p343
      %p350 = scmp.eq.s32.totalorder %s20, 1
      %p351 = por %p349, %p350
      %p352 = scmp.ne.s32.totalorder %s344, %s347
      %p353 = scmp.eq.s32.totalorder %s20, 0
      %p354 = por %p352, %p353
      %p355 = scmp.ne.s32.totalorder %s344, %s347
      %p356 = scmp.eq.s32.totalorder %s25, 1
      %p357 = por %p355, %p356
      %p358 = scmp.ne.s32.totalorder %s347, %s348
      %p359 = scmp.eq.s32.totalorder %s25, 0
      %p360 = por %p358, %p359
      %p361 = scmp.ne.s32.totalorder %s347, %s348
      %p362 = scmp.eq.s32.totalorder %s26, 1
      %p363 = por %p361, %p362
      %p365 = scmp.ne.s32.totalorder %s348, %s364
      %p366 = scmp.eq.s32.totalorder %s26, 0
      %p367 = por %p365, %p366
      %p368 = scmp.le.s32.totalorder 1, %s20
      %p369 = scmp.lt.s32.totalorder %s20, 3
      %p370 = pnand %p368, %p369
      %p371 = pneg %p370
      // Predicated region
      $region9: #{tpu_custom_call.1} parent=5 // pred_check
        _
      $region10: #{tpu_custom_call.1} parent=5 // pred_check_branch
        %373 = sbr.rel (%p370) target = $region12
      $region11: #{tpu_custom_call.1} parent=5 // pred_region
        %s374 = ssub.s32 %s20, 1
        // Predicated region
        $region13: #{tpu_custom_call.1} parent=11 // pred_check
          %p375 = pneg %p58
        $region14: #{tpu_custom_call.1} parent=11 // pred_check_branch
          %377 = sbr.rel (%p375) target = $region16
        $region15: #{tpu_custom_call.1} parent=11 // pred_region
          %s378 = smul.u32 2, %s29
          %s380 = ssub.s32 256, 256
          %381 = vsyncadd [#allocation3], %s380
          %s382 = smul.addr %s378, 128
          %s383 = scalar_lea.hbm %s0, %s382
          %s384 = sshll.u32 [#allocation2], 4
          %s385 = int_to_ptr.vmem [resolvable:$true] %s384
          %390 = dma.hbm_to_vmem [thread:$0]  %s383, 256, %s385, [#allocation3], 128, 128, 8
        $region16: #{tpu_custom_call.1} parent=11 // pred_fallthru
          _
        // Predicated region
        $region17: #{tpu_custom_call.1} parent=11 // pred_check
          %p391 = pneg %p84
        $region18: #{tpu_custom_call.1} parent=11 // pred_check_branch
          %393 = sbr.rel (%p391) target = $region20
        $region19: #{tpu_custom_call.1} parent=11 // pred_region
          %s394 = smul.u32 2, %s29
          %p395 = scmp.lt.s32.totalorder %s394, 1
          %s396 = scalar_select %p395, %s394, 1
          %s397 = scalar_lea.vmem %s1, %s396
          %s398 = smul.u32 2, %s29
        $region20: #{tpu_custom_call.1} parent=11 // pred_fallthru
          _
        // Predicated region
        $region21: #{tpu_custom_call.1} parent=11 // pred_check
          %p399 = pneg %p313
        $region22: #{tpu_custom_call.1} parent=11 // pred_check_branch
          %401 = sbr.rel (%p399) target = $region24
        $region23: #{tpu_custom_call.1} parent=11 // pred_region
          _
        $region24: #{tpu_custom_call.1} parent=11 // pred_fallthru
          _
        // Predicated region
        $region25: #{tpu_custom_call.1} parent=11 // pred_check
          %p402 = pneg %p334
        $region26: #{tpu_custom_call.1} parent=11 // pred_check_branch
          %404 = sbr.rel (%p402) target = $region28
        $region27: #{tpu_custom_call.1} parent=11 // pred_region
          _
        $region28: #{tpu_custom_call.1} parent=11 // pred_fallthru
          _
      $region12: #{tpu_custom_call.1} parent=5 // pred_fallthru
        _
      %p405 = scmp.lt.s32.totalorder %s20, 2
      // Predicated region
      $region29: #{tpu_custom_call.1} parent=5 // pred_check
        %p406 = pneg %p405
      $region30: #{tpu_custom_call.1} parent=5 // pred_check_branch
        %408 = sbr.rel (%p406) target = $region32
      $region31: #{tpu_custom_call.1} parent=5 // pred_region
        // Predicated region
        $region33: #{tpu_custom_call.1} parent=31 // pred_check
          %p409 = pneg %p104
        $region34: #{tpu_custom_call.1} parent=31 // pred_check_branch
          %411 = sbr.rel (%p409) target = $region36
        $region35: #{tpu_custom_call.1} parent=31 // pred_region
          %p412 = scmp.lt.s32.totalorder %s28, 1
          %s413 = scalar_select %p412, %s28, 1
          %s414 = smul.addr %s413, 4
          %s415 = smul.addr %s414, 4
          %s416 = scalar_lea.vmem %s2, %s415
        $region36: #{tpu_custom_call.1} parent=31 // pred_fallthru
          _
        // Predicated region
        $region37: #{tpu_custom_call.1} parent=31 // pred_check
          %p417 = pneg %p130
        $region38: #{tpu_custom_call.1} parent=31 // pred_check_branch
          %419 = sbr.rel (%p417) target = $region40
        $region39: #{tpu_custom_call.1} parent=31 // pred_region
          %p420 = scmp.lt.s32.totalorder %s28, 1
          %s421 = scalar_select %p420, %s28, 1
          %s422 = scalar_lea.vmem %s3, %s421
        $region40: #{tpu_custom_call.1} parent=31 // pred_fallthru
          _
        // Predicated region
        $region41: #{tpu_custom_call.1} parent=31 // pred_check
          %p423 = pneg %p156
        $region42: #{tpu_custom_call.1} parent=31 // pred_check_branch
          %425 = sbr.rel (%p423) target = $region44
        $region43: #{tpu_custom_call.1} parent=31 // pred_region
          %p426 = scmp.lt.s32.totalorder %s28, 1
          %s427 = scalar_select %p426, %s28, 1
          %s428 = smul.addr %s427, 4
          %s429 = smul.addr %s428, 4
          %s430 = scalar_lea.vmem %s4, %s429
        $region44: #{tpu_custom_call.1} parent=31 // pred_fallthru
          _
        // Predicated region
        $region45: #{tpu_custom_call.1} parent=31 // pred_check
          %p431 = pneg %p182
        $region46: #{tpu_custom_call.1} parent=31 // pred_check_branch
          %433 = sbr.rel (%p431) target = $region48
        $region47: #{tpu_custom_call.1} parent=31 // pred_region
          %p434 = scmp.lt.s32.totalorder %s28, 1
          %s435 = scalar_select %p434, %s28, 1
          %s436 = scalar_lea.vmem %s5, %s435
        $region48: #{tpu_custom_call.1} parent=31 // pred_fallthru
          _
        // Predicated region
        $region49: #{tpu_custom_call.1} parent=31 // pred_check
          %p437 = pneg %p208
        $region50: #{tpu_custom_call.1} parent=31 // pred_check_branch
          %439 = sbr.rel (%p437) target = $region52
        $region51: #{tpu_custom_call.1} parent=31 // pred_region
          %p440 = scmp.lt.s32.totalorder %s28, 1
          %s441 = scalar_select %p440, %s28, 1
          %s442 = smul.addr %s441, 4
          %s443 = smul.addr %s442, 4
          %s444 = scalar_lea.vmem %s6, %s443
        $region52: #{tpu_custom_call.1} parent=31 // pred_fallthru
          _
        // Predicated region
        $region53: #{tpu_custom_call.1} parent=31 // pred_check
          %p445 = pneg %p234
        $region54: #{tpu_custom_call.1} parent=31 // pred_check_branch
          %447 = sbr.rel (%p445) target = $region56
        $region55: #{tpu_custom_call.1} parent=31 // pred_region
          %p448 = scmp.lt.s32.totalorder %s28, 1
          %s449 = scalar_select %p448, %s28, 1
          %s450 = scalar_lea.vmem %s7, %s449
        $region56: #{tpu_custom_call.1} parent=31 // pred_fallthru
          _
        // Predicated region
        $region57: #{tpu_custom_call.1} parent=31 // pred_check
          %p451 = pneg %p260
        $region58: #{tpu_custom_call.1} parent=31 // pred_check_branch
          %453 = sbr.rel (%p451) target = $region60
        $region59: #{tpu_custom_call.1} parent=31 // pred_region
          %p454 = scmp.lt.s32.totalorder %s28, 1
          %s455 = scalar_select %p454, %s28, 1
          %s456 = smul.addr %s455, 8
          %s457 = smul.addr %s456, 4
          %s458 = scalar_lea.vmem %s8, %s457
        $region60: #{tpu_custom_call.1} parent=31 // pred_fallthru
          _
        // Predicated region
        $region61: #{tpu_custom_call.1} parent=31 // pred_check
          %p459 = pneg %p286
        $region62: #{tpu_custom_call.1} parent=31 // pred_check_branch
          %461 = sbr.rel (%p459) target = $region64
        $region63: #{tpu_custom_call.1} parent=31 // pred_region
          %p462 = scmp.lt.s32.totalorder %s28, 1
          %s463 = scalar_select %p462, %s28, 1
          %s464 = scalar_lea.vmem %s9, %s463
        $region64: #{tpu_custom_call.1} parent=31 // pred_fallthru
          _
      $region32: #{tpu_custom_call.1} parent=5 // pred_fallthru
        _
      %p465 = scmp.le.s32.totalorder 1, %s20
      %p466 = scmp.lt.s32.totalorder %s20, 3
      %p467 = pnand %p465, %p466
      %p468 = pneg %p467
      // Predicated region
      $region65: #{tpu_custom_call.1} parent=5 // pred_check
        _
      $region66: #{tpu_custom_call.1} parent=5 // pred_check_branch
        %470 = sbr.rel (%p467) target = $region68
      $region67: #{tpu_custom_call.1} parent=5 // pred_region
        %s471 = ssub.s32 %s20, 1
        // Predicated region
        $region69: #{tpu_custom_call.1} parent=67 // pred_check
          %p472 = pneg %p58
        $region70: #{tpu_custom_call.1} parent=67 // pred_check_branch
          %474 = sbr.rel (%p472) target = $region72
        $region71: #{tpu_custom_call.1} parent=67 // pred_region
          %475 = dma.done [#allocation3], 256
        $region72: #{tpu_custom_call.1} parent=67 // pred_fallthru
          _
        %p476 = pneg %p58
        %p477 = pneg %p55
        %s478 = smul.u32 2, %s29
        %p479 = scmp.lt.s32.totalorder %s478, 1
        %s480 = scalar_select %p479, %s478, 1
        %s481 = scalar_lea.vmem %s1, %s480
        %p482 = pneg %p84
        %p483 = pneg %p81
        %p484 = scmp.lt.s32.totalorder %s30, 1
        %s485 = scalar_select %p484, %s30, 1
        %s486 = smul.addr %s485, 4
        %s487 = smul.addr %s486, 4
        %s488 = scalar_lea.vmem %s2, %s487
        %p489 = pneg %p110
        %p490 = pneg %p107
        %p491 = scmp.lt.s32.totalorder %s30, 1
        %s492 = scalar_select %p491, %s30, 1
        %s493 = scalar_lea.vmem %s3, %s492
        %p494 = pneg %p136
        %p495 = pneg %p133
        %p496 = scmp.lt.s32.totalorder %s30, 1
        %s497 = scalar_select %p496, %s30, 1
        %s498 = smul.addr %s497, 4
        %s499 = smul.addr %s498, 4
        %s500 = scalar_lea.vmem %s4, %s499
        %p501 = pneg %p162
        %p502 = pneg %p159
        %p503 = scmp.lt.s32.totalorder %s30, 1
        %s504 = scalar_select %p503, %s30, 1
        %s505 = scalar_lea.vmem %s5, %s504
        %p506 = pneg %p188
        %p507 = pneg %p185
        %p508 = scmp.lt.s32.totalorder %s30, 1
        %s509 = scalar_select %p508, %s30, 1
        %s510 = smul.addr %s509, 4
        %s511 = smul.addr %s510, 4
        %s512 = scalar_lea.vmem %s6, %s511
        %p513 = pneg %p214
        %p514 = pneg %p211
        %p515 = scmp.lt.s32.totalorder %s30, 1
        %s516 = scalar_select %p515, %s30, 1
        %s517 = scalar_lea.vmem %s7, %s516
        %p518 = pneg %p240
        %p519 = pneg %p237
        %p520 = scmp.lt.s32.totalorder %s30, 1
        %s521 = scalar_select %p520, %s30, 1
        %s522 = smul.addr %s521, 8
        %s523 = smul.addr %s522, 4
        %s524 = scalar_lea.vmem %s8, %s523
        %p525 = pneg %p266
        %p526 = pneg %p263
        %p527 = scmp.lt.s32.totalorder %s30, 1
        %s528 = scalar_select %p527, %s30, 1
        %s529 = scalar_lea.vmem %s9, %s528
        %p530 = pneg %p292
        %p531 = pneg %p289
        %p532 = pneg %p313
        %p533 = pneg %p310
        %p534 = pneg %p334
        %p535 = pneg %p331
        %p536 = pneg %p360
        %p537 = pneg %p357
        %s538 = smul.u32 2, %s29
        %s539 = smul.u32 2, %s29
        %p540 = scmp.lt.s32.totalorder %s539, 1
        %s541 = scalar_select %p540, %s539, 1
        %s542 = scalar_lea.vmem %s1, %s541
        %s543 = smul.u32 2, %s29
        %p544 = scmp.lt.s32.totalorder %s30, 1
        %s545 = scalar_select %p544, %s30, 1
        %s546 = smul.addr %s545, 4
        %s547 = smul.addr %s546, 4
        %s548 = scalar_lea.vmem %s2, %s547
        %p549 = scmp.lt.s32.totalorder %s30, 1
        %s550 = scalar_select %p549, %s30, 1
        %s551 = scalar_lea.vmem %s3, %s550
        %p552 = scmp.lt.s32.totalorder %s30, 1
        %s553 = scalar_select %p552, %s30, 1
        %s554 = smul.addr %s553, 4
        %s555 = smul.addr %s554, 4
        %s556 = scalar_lea.vmem %s4, %s555
        %p557 = scmp.lt.s32.totalorder %s30, 1
        %s558 = scalar_select %p557, %s30, 1
        %s559 = scalar_lea.vmem %s5, %s558
        %p560 = scmp.lt.s32.totalorder %s30, 1
        %s561 = scalar_select %p560, %s30, 1
        %s562 = smul.addr %s561, 4
        %s563 = smul.addr %s562, 4
        %s564 = scalar_lea.vmem %s6, %s563
        %p565 = scmp.lt.s32.totalorder %s30, 1
        %s566 = scalar_select %p565, %s30, 1
        %s567 = scalar_lea.vmem %s7, %s566
        %p568 = scmp.lt.s32.totalorder %s30, 1
        %s569 = scalar_select %p568, %s30, 1
        %s570 = smul.addr %s569, 8
        %s571 = smul.addr %s570, 4
        %s572 = scalar_lea.vmem %s8, %s571
        %p573 = scmp.lt.s32.totalorder %s30, 1
        %s574 = scalar_select %p573, %s30, 1
        %s575 = scalar_lea.vmem %s9, %s574
        %s576 = smul.u32 2, %s29
        %p578 = scmp.eq.s32.totalorder %s30, 0
        // Predicated region
        $region73: #{tpu_custom_call.1} parent=67 // pred_check
          %p579 = pneg %p578
        $region74: #{tpu_custom_call.1} parent=67 // pred_check_branch
          %581 = sbr.rel (%p579) target = $region76
        $region75: #{tpu_custom_call.1} parent=67 // pred_region
          %v582 = vld [vmem:[#allocation2] sm:$0xff]
          %v583 = vld [vmem:[#allocation2 + $0x8] sm:$0xff]
          %vm584 = vcmask 261120
          %585 = vst.msk [vmem:[#allocation5] sm:$0xff] %vm584, %v582
          %586 = vst.msk [vmem:[#allocation5 + $0x8] sm:$0xff] %vm584, %v583
        $region76: #{tpu_custom_call.1} parent=67 // pred_fallthru
          _
        %v587 = vld [vmem:[#allocation5] sm:$0xff]
        %v588 = vld [vmem:[#allocation5 + $0x8] sm:$0xff]
        %v589 = vld [vmem:[%s542] sm:$0x1]
        %v590 = vld [vmem:[%s542 + $0x1] sm:$0x1]
        %v593 = vlaneseq
        %v594 = vshrl.u32 %v593, 7
        %v595 = vsub.s32 0, %v594
        %v596 = vrot.slane %v589, %v595
        %v597 = vlaneseq
        %v598 = vshrl.u32 %v597, 7
        %v599 = vsub.s32 0, %v598
        %v600 = vrot.slane %v590, %v599
        %vm603 = vcmask 261120
        %v604 = vsel %vm603, %v587, 0.0
        %605 = vadd.xlane.f32.xlu0 %v604
        %v606 = vpop.xlane.xlu0 %605
        %v607 = vsel %vm603, %v588, 0.0
        %608 = vadd.xlane.f32.xlu0 %v607
        %v609 = vpop.xlane.xlu0 %608
        %v610 = vrcp.pop 32.0
        %v611 = vmul.f32 %v606, %v610
        %v612 = vmul.f32 %v609, %v610
        %v613 = vsub.f32 %v587, %v611
        %v614 = vsub.f32 %v588, %v612
        %v615 = vmul.f32 %v613, %v613
        %v616 = vmul.f32 %v614, %v614
        %v617 = vsel %vm603, %v615, 0.0
        %618 = vadd.xlane.f32.xlu0 %v617
        %v619 = vpop.xlane.xlu0 %618
        %v620 = vsel %vm603, %v616, 0.0
        %621 = vadd.xlane.f32.xlu0 %v620
        %v622 = vpop.xlane.xlu0 %621
        %v623 = vmul.f32 %v619, %v610
        %v624 = vmul.f32 %v622, %v610
        %v625 = vadd.f32 %v623, 1e-05
        %v626 = vadd.f32 %v624, 1e-05
        %v627 = vrsqrt.pop %v625
        %v628 = vrsqrt.pop %v626
        %v629 = vmul.f32 %v613, %v627
        %v630 = vmul.f32 %v614, %v628
        %v631 = vpack.c.bf16 %v630, %v629
        %v632 = vld [vmem:[%s548] sm:$0xf]
        %v633 = vld [vmem:[%s548 + $0x4] sm:$0xf]
        %v634 = vld [vmem:[%s548 + $0x8] sm:$0xf]
        %v635 = vld [vmem:[%s548 + $0xc] sm:$0xf]
        %v636 = vld [vmem:[%s551] sm:$0x1]
        %v638 = vlaneseq
        %v639 = vshrl.u32 %v638, 7
        %v640 = vsub.s32 0, %v639
        %v641 = vrot.slane %v636, %v640
        %v647 = vunpack.c.l.b16 %v632
        %v648 = vunpack.c.l.b16 %v633
        %v649 = vunpack.c.l.b16 %v634
        %v650 = vunpack.c.l.b16 %v635
        %v651 = vpack.c.b16 %v648, %v647
        %v652 = vpack.c.b16 %v650, %v649
        %v656 = vsel %vm603, %v631, 0
        %658 = vmatprep.subr.bf16.mxu0 0
        %659 = vmatpush1.bf16.msra.mxu0 %v651
        %660 = vmatprep.subr.bf16.mxu0 0
        %661 = vmatpush1.bf16.msra.mxu0 %v652
        %662 = vmatprep.subr.bf16.mxu0 0
        %663 = vmatpush1.bf16.msra.mxu0 0
        %664 = vmatprep.subr.bf16.mxu0 0
        %665 = vmatpush1.bf16.msra.mxu0 0
        %666 = vmatprep.subr.bf16.mxu0 0
        %667 = vmatpush1.bf16.msra.mxu0 0
        %668 = vmatprep.subr.bf16.mxu0 0
        %669 = vmatpush1.bf16.msra.mxu0 0
        %670 = vmatprep.subr.bf16.mxu0 0
        %671 = vmatpush1.bf16.msra.mxu0 0
        %672 = vmatprep.subr.bf16.mxu0 0
        %673 = vmatpush1.bf16.msra.mxu0 0
        %674 = vmatprep.subr.bf16.mxu0 0
        %675 = vmatpush1.bf16.msra.mxu0 0
        %676 = vmatprep.subr.bf16.mxu0 0
        %677 = vmatpush1.bf16.msra.mxu0 0
        %678 = vmatprep.subr.bf16.mxu0 0
        %679 = vmatpush1.bf16.msra.mxu0 0
        %680 = vmatprep.subr.bf16.mxu0 0
        %681 = vmatpush1.bf16.msra.mxu0 0
        %682 = vmatprep.subr.bf16.mxu0 0
        %683 = vmatpush1.bf16.msra.mxu0 0
        %684 = vmatprep.subr.bf16.mxu0 0
        %685 = vmatpush1.bf16.msra.mxu0 0
        %686 = vmatprep.subr.bf16.mxu0 0
        %687 = vmatpush1.bf16.msra.mxu0 0
        %688 = vmatprep.subr.bf16.mxu0 0
        %689 = vmatpush1.bf16.msra.mxu0 0
        %690 = vmatprep.mubr.bf16.mxu0 0
        %691 = vmatmul.mubr.bf16.gmra.mrb[0].mxu0 %v656
        %v692 = vpop.f32.mrb[0].mxu0
        %v693 = vadd.f32 %v641, %v692
        %v694 = vpop.f32.mrb[0].mxu0
        %v695 = vpop.f32.mrb[0].mxu0
        %v696 = vadd.f32 %v641, %v695
        %v697 = vpop.f32.mrb[0].mxu0
        %698 = vdwg.mxu0
        %v699 = vpack.c.bf16 %v693, %v693
        %v700 = vpack.c.bf16 %v696, %v696
        %702 = vrot.lane.b32.xlu0 %v699, 96
        %v703 = vpop.permute.xlu0 %702
        %vm704 = vcmask 64512
        %v706 = vsel %vm704, %v699, 0
        %v709 = vsel %vm704, %v703, 0
        %711 = vmatprep.subr.bf16.mxu0 0
        %712 = vmatpush1.bf16.xpose.msra.mxu0 %v709
        %713 = vmatprep.subr.bf16.mxu0 0
        %714 = vmatpush1.bf16.xpose.msra.mxu0 0
        %715 = vmatprep.subr.bf16.mxu0 0
        %716 = vmatpush1.bf16.xpose.msra.mxu0 0
        %717 = vmatprep.subr.bf16.mxu0 0
        %718 = vmatpush1.bf16.xpose.msra.mxu0 0
        %719 = vmatprep.subr.bf16.mxu0 0
        %720 = vmatpush1.bf16.xpose.msra.mxu0 0
        %721 = vmatprep.subr.bf16.mxu0 0
        %722 = vmatpush1.bf16.xpose.msra.mxu0 0
        %723 = vmatprep.subr.bf16.mxu0 0
        %724 = vmatpush1.bf16.xpose.msra.mxu0 0
        %725 = vmatprep.subr.bf16.mxu0 0
        %726 = vmatpush1.bf16.xpose.msra.mxu0 0
        %727 = vmatprep.subr.bf16.mxu0 0
        %728 = vmatpush1.bf16.xpose.msra.mxu0 0
        %729 = vmatprep.subr.bf16.mxu0 0
        %730 = vmatpush1.bf16.xpose.msra.mxu0 0
        %731 = vmatprep.subr.bf16.mxu0 0
        %732 = vmatpush1.bf16.xpose.msra.mxu0 0
        %733 = vmatprep.subr.bf16.mxu0 0
        %734 = vmatpush1.bf16.xpose.msra.mxu0 0
        %735 = vmatprep.subr.bf16.mxu0 0
        %736 = vmatpush1.bf16.xpose.msra.mxu0 0
        %737 = vmatprep.subr.bf16.mxu0 0
        %738 = vmatpush1.bf16.xpose.msra.mxu0 0
        %739 = vmatprep.subr.bf16.mxu0 0
        %740 = vmatpush1.bf16.xpose.msra.mxu0 0
        %741 = vmatprep.subr.bf16.mxu0 0
        %742 = vmatpush1.bf16.xpose.msra.mxu0 0
        %743 = vmatprep.mubr.bf16.mxu0 0
        %744 = vmatmul.mubr.bf16.gmra.mrb[0].mxu0 %v706
        %v745 = vpop.f32.mrb[0].mxu0
        %v746 = vadd.f32 0.0, %v745
        %v747 = vpop.f32.mrb[0].mxu0
        %v748 = vpop.f32.mrb[0].mxu0
        %v749 = vpop.f32.mrb[0].mxu0
        %750 = vdwg.mxu0
        %752 = vrot.lane.b32.xlu0 %v700, 96
        %v753 = vpop.permute.xlu0 %752
        %v755 = vsel %vm704, %v700, 0
        %v758 = vsel %vm704, %v753, 0
        %760 = vmatprep.subr.bf16.mxu0 0
        %761 = vmatpush1.bf16.xpose.msra.mxu0 %v758
        %762 = vmatprep.subr.bf16.mxu0 0
        %763 = vmatpush1.bf16.xpose.msra.mxu0 0
        %764 = vmatprep.subr.bf16.mxu0 0
        %765 = vmatpush1.bf16.xpose.msra.mxu0 0
        %766 = vmatprep.subr.bf16.mxu0 0
        %767 = vmatpush1.bf16.xpose.msra.mxu0 0
        %768 = vmatprep.subr.bf16.mxu0 0
        %769 = vmatpush1.bf16.xpose.msra.mxu0 0
        %770 = vmatprep.subr.bf16.mxu0 0
        %771 = vmatpush1.bf16.xpose.msra.mxu0 0
        %772 = vmatprep.subr.bf16.mxu0 0
        %773 = vmatpush1.bf16.xpose.msra.mxu0 0
        %774 = vmatprep.subr.bf16.mxu0 0
        %775 = vmatpush1.bf16.xpose.msra.mxu0 0
        %776 = vmatprep.subr.bf16.mxu0 0
        %777 = vmatpush1.bf16.xpose.msra.mxu0 0
        %778 = vmatprep.subr.bf16.mxu0 0
        %779 = vmatpush1.bf16.xpose.msra.mxu0 0
        %780 = vmatprep.subr.bf16.mxu0 0
        %781 = vmatpush1.bf16.xpose.msra.mxu0 0
        %782 = vmatprep.subr.bf16.mxu0 0
        %783 = vmatpush1.bf16.xpose.msra.mxu0 0
        %784 = vmatprep.subr.bf16.mxu0 0
        %785 = vmatpush1.bf16.xpose.msra.mxu0 0
        %786 = vmatprep.subr.bf16.mxu0 0
        %787 = vmatpush1.bf16.xpose.msra.mxu0 0
        %788 = vmatprep.subr.bf16.mxu0 0
        %789 = vmatpush1.bf16.xpose.msra.mxu0 0
        %790 = vmatprep.subr.bf16.mxu0 0
        %791 = vmatpush1.bf16.xpose.msra.mxu0 0
        %792 = vmatprep.mubr.bf16.mxu0 0
        %793 = vmatmul.mubr.bf16.gmra.mrb[0].mxu0 %v755
        %v794 = vpop.f32.mrb[0].mxu0
        %v795 = vadd.f32 0.0, %v794
        %v796 = vpop.f32.mrb[0].mxu0
        %v797 = vpop.f32.mrb[0].mxu0
        %v798 = vpop.f32.mrb[0].mxu0
        %799 = vdwg.mxu0
        %v800 = vmul.f32 %v746, 0.35355338
        %v801 = vmul.f32 %v795, 0.35355338
        %v802 = vadd.f32 %v800, %v596
        %v803 = vadd.f32 %v801, %v600
        %v804 = vsel %vm704, %v802, -inf
        %805 = vmax.xlane.f32.xlu0 %v804
        %v806 = vpop.xlane.xlu0 %805
        %v807 = vsel %vm704, %v803, -inf
        %808 = vmax.xlane.f32.xlu0 %v807
        %v809 = vpop.xlane.xlu0 %808
        %v810 = vsub.f32 %v802, %v806
        %v811 = vsub.f32 %v803, %v809
        %v812 = vmul.f32 %v810, 1.442695
        %v813 = vpow.pop %v812
        %v814 = vmul.f32 %v811, 1.442695
        %v815 = vpow.pop %v814
        %v816 = vsel %vm704, %v813, 0.0
        %817 = vadd.xlane.f32.xlu0 %v816
        %v818 = vpop.xlane.xlu0 %817
        %v819 = vsel %vm704, %v815, 0.0
        %820 = vadd.xlane.f32.xlu0 %v819
        %v821 = vpop.xlane.xlu0 %820
        %v822 = vrcp.pop %v818
        %v823 = vrcp.pop %v821
        %v824 = vmul.f32 %v813, %v822
        %v825 = vmul.f32 %v815, %v823
        %v826 = vpack.c.bf16 %v824, %v824
        %v827 = vpack.c.bf16 %v825, %v825
        %828 = vrot.lane.b32.xlu0 %v699, 64
        %v829 = vpop.permute.xlu0 %828
        %v831 = vsel %vm704, %v826, 0
        %vm833 = vcmask 1043456
        %v835 = vsel %vm833, %v829, 0
        %837 = vmatprep.subr.bf16.mxu0 0
        %838 = vmatpush1.bf16.msra.mxu0 %v835
        %839 = vmatprep.subr.bf16.mxu0 0
        %840 = vmatpush1.bf16.msra.mxu0 0
        %841 = vmatprep.subr.bf16.mxu0 0
        %842 = vmatpush1.bf16.msra.mxu0 0
        %843 = vmatprep.subr.bf16.mxu0 0
        %844 = vmatpush1.bf16.msra.mxu0 0
        %845 = vmatprep.subr.bf16.mxu0 0
        %846 = vmatpush1.bf16.msra.mxu0 0
        %847 = vmatprep.subr.bf16.mxu0 0
        %848 = vmatpush1.bf16.msra.mxu0 0
        %849 = vmatprep.subr.bf16.mxu0 0
        %850 = vmatpush1.bf16.msra.mxu0 0
        %851 = vmatprep.subr.bf16.mxu0 0
        %852 = vmatpush1.bf16.msra.mxu0 0
        %853 = vmatprep.subr.bf16.mxu0 0
        %854 = vmatpush1.bf16.msra.mxu0 0
        %855 = vmatprep.subr.bf16.mxu0 0
        %856 = vmatpush1.bf16.msra.mxu0 0
        %857 = vmatprep.subr.bf16.mxu0 0
        %858 = vmatpush1.bf16.msra.mxu0 0
        %859 = vmatprep.subr.bf16.mxu0 0
        %860 = vmatpush1.bf16.msra.mxu0 0
        %861 = vmatprep.subr.bf16.mxu0 0
        %862 = vmatpush1.bf16.msra.mxu0 0
        %863 = vmatprep.subr.bf16.mxu0 0
        %864 = vmatpush1.bf16.msra.mxu0 0
        %865 = vmatprep.subr.bf16.mxu0 0
        %866 = vmatpush1.bf16.msra.mxu0 0
        %867 = vmatprep.subr.bf16.mxu0 0
        %868 = vmatpush1.bf16.msra.mxu0 0
        %869 = vmatprep.mubr.bf16.mxu0 0
        %870 = vmatmul.mubr.bf16.gmra.mrb[0].mxu0 %v831
        %v871 = vpop.f32.mrb[0].mxu0
        %v872 = vadd.f32 0.0, %v871
        %v873 = vpop.f32.mrb[0].mxu0
        %v874 = vpop.f32.mrb[0].mxu0
        %v875 = vpop.f32.mrb[0].mxu0
        %876 = vdwg.mxu0
        %877 = vrot.lane.b32.xlu0 %v700, 64
        %v878 = vpop.permute.xlu0 %877
        %v880 = vsel %vm704, %v827, 0
        %v883 = vsel %vm833, %v878, 0
        %885 = vmatprep.subr.bf16.mxu0 0
        %886 = vmatpush1.bf16.msra.mxu0 %v883
        %887 = vmatprep.subr.bf16.mxu0 0
        %888 = vmatpush1.bf16.msra.mxu0 0
        %889 = vmatprep.subr.bf16.mxu0 0
        %890 = vmatpush1.bf16.msra.mxu0 0
        %891 = vmatprep.subr.bf16.mxu0 0
        %892 = vmatpush1.bf16.msra.mxu0 0
        %893 = vmatprep.subr.bf16.mxu0 0
        %894 = vmatpush1.bf16.msra.mxu0 0
        %895 = vmatprep.subr.bf16.mxu0 0
        %896 = vmatpush1.bf16.msra.mxu0 0
        %897 = vmatprep.subr.bf16.mxu0 0
        %898 = vmatpush1.bf16.msra.mxu0 0
        %899 = vmatprep.subr.bf16.mxu0 0
        %900 = vmatpush1.bf16.msra.mxu0 0
        %901 = vmatprep.subr.bf16.mxu0 0
        %902 = vmatpush1.bf16.msra.mxu0 0
        %903 = vmatprep.subr.bf16.mxu0 0
        %904 = vmatpush1.bf16.msra.mxu0 0
        %905 = vmatprep.subr.bf16.mxu0 0
        %906 = vmatpush1.bf16.msra.mxu0 0
        %907 = vmatprep.subr.bf16.mxu0 0
        %908 = vmatpush1.bf16.msra.mxu0 0
        %909 = vmatprep.subr.bf16.mxu0 0
        %910 = vmatpush1.bf16.msra.mxu0 0
        %911 = vmatprep.subr.bf16.mxu0 0
        %912 = vmatpush1.bf16.msra.mxu0 0
        %913 = vmatprep.subr.bf16.mxu0 0
        %914 = vmatpush1.bf16.msra.mxu0 0
        %915 = vmatprep.subr.bf16.mxu0 0
        %916 = vmatpush1.bf16.msra.mxu0 0
        %917 = vmatprep.mubr.bf16.mxu0 0
        %918 = vmatmul.mubr.bf16.gmra.mrb[0].mxu0 %v880
        %v919 = vpop.f32.mrb[0].mxu0
        %v920 = vadd.f32 0.0, %v919
        %v921 = vpop.f32.mrb[0].mxu0
        %v922 = vpop.f32.mrb[0].mxu0
        %v923 = vpop.f32.mrb[0].mxu0
        %924 = vdwg.mxu0
        %v925 = vpack.c.bf16 %v920, %v872
        %v926 = vld [vmem:[%s556] sm:$0xf]
        %927 = vrot.lane.b32.xlu0 %v699, 120
        %v928 = vpop.permute.xlu0 %927
        %929 = vrot.lane.b32.xlu0 %v699, 88
        %v930 = vpop.permute.xlu0 %929
        %v932 = vsel %vm704, %v928, 0
        %v935 = vsel %vm704, %v930, 0
        %937 = vmatprep.subr.bf16.mxu0 0
        %938 = vmatpush1.bf16.xpose.msra.mxu0 %v935
        %939 = vmatprep.subr.bf16.mxu0 0
        %940 = vmatpush1.bf16.xpose.msra.mxu0 0
        %941 = vmatprep.subr.bf16.mxu0 0
        %942 = vmatpush1.bf16.xpose.msra.mxu0 0
        %943 = vmatprep.subr.bf16.mxu0 0
        %944 = vmatpush1.bf16.xpose.msra.mxu0 0
        %945 = vmatprep.subr.bf16.mxu0 0
        %946 = vmatpush1.bf16.xpose.msra.mxu0 0
        %947 = vmatprep.subr.bf16.mxu0 0
        %948 = vmatpush1.bf16.xpose.msra.mxu0 0
        %949 = vmatprep.subr.bf16.mxu0 0
        %950 = vmatpush1.bf16.xpose.msra.mxu0 0
        %951 = vmatprep.subr.bf16.mxu0 0
        %952 = vmatpush1.bf16.xpose.msra.mxu0 0
        %953 = vmatprep.subr.bf16.mxu0 0
        %954 = vmatpush1.bf16.xpose.msra.mxu0 0
        %955 = vmatprep.subr.bf16.mxu0 0
        %956 = vmatpush1.bf16.xpose.msra.mxu0 0
        %957 = vmatprep.subr.bf16.mxu0 0
        %958 = vmatpush1.bf16.xpose.msra.mxu0 0
        %959 = vmatprep.subr.bf16.mxu0 0
        %960 = vmatpush1.bf16.xpose.msra.mxu0 0
        %961 = vmatprep.subr.bf16.mxu0 0
        %962 = vmatpush1.bf16.xpose.msra.mxu0 0
        %963 = vmatprep.subr.bf16.mxu0 0
        %964 = vmatpush1.bf16.xpose.msra.mxu0 0
        %965 = vmatprep.subr.bf16.mxu0 0
        %966 = vmatpush1.bf16.xpose.msra.mxu0 0
        %967 = vmatprep.subr.bf16.mxu0 0
        %968 = vmatpush1.bf16.xpose.msra.mxu0 0
        %969 = vmatprep.mubr.bf16.mxu0 0
        %970 = vmatmul.mubr.bf16.gmra.mrb[0].mxu0 %v932
        %v971 = vpop.f32.mrb[0].mxu0
        %v972 = vadd.f32 0.0, %v971
        %v973 = vpop.f32.mrb[0].mxu0
        %v974 = vpop.f32.mrb[0].mxu0
        %v975 = vpop.f32.mrb[0].mxu0
        %976 = vdwg.mxu0
        %977 = vrot.lane.b32.xlu0 %v700, 120
        %v978 = vpop.permute.xlu0 %977
        %979 = vrot.lane.b32.xlu0 %v700, 88
        %v980 = vpop.permute.xlu0 %979
        %v982 = vsel %vm704, %v978, 0
        %v985 = vsel %vm704, %v980, 0
        %987 = vmatprep.subr.bf16.mxu0 0
        %988 = vmatpush1.bf16.xpose.msra.mxu0 %v985
        %989 = vmatprep.subr.bf16.mxu0 0
        %990 = vmatpush1.bf16.xpose.msra.mxu0 0
        %991 = vmatprep.subr.bf16.mxu0 0
        %992 = vmatpush1.bf16.xpose.msra.mxu0 0
        %993 = vmatprep.subr.bf16.mxu0 0
        %994 = vmatpush1.bf16.xpose.msra.mxu0 0
        %995 = vmatprep.subr.bf16.mxu0 0
        %996 = vmatpush1.bf16.xpose.msra.mxu0 0
        %997 = vmatprep.subr.bf16.mxu0 0
        %998 = vmatpush1.bf16.xpose.msra.mxu0 0
        %999 = vmatprep.subr.bf16.mxu0 0
        %1000 = vmatpush1.bf16.xpose.msra.mxu0 0
        %1001 = vmatprep.subr.bf16.mxu0 0
        %1002 = vmatpush1.bf16.xpose.msra.mxu0 0
        %1003 = vmatprep.subr.bf16.mxu0 0
        %1004 = vmatpush1.bf16.xpose.msra.mxu0 0
        %1005 = vmatprep.subr.bf16.mxu0 0
        %1006 = vmatpush1.bf16.xpose.msra.mxu0 0
        %1007 = vmatprep.subr.bf16.mxu0 0
        %1008 = vmatpush1.bf16.xpose.msra.mxu0 0
        %1009 = vmatprep.subr.bf16.mxu0 0
        %1010 = vmatpush1.bf16.xpose.msra.mxu0 0
        %1011 = vmatprep.subr.bf16.mxu0 0
        %1012 = vmatpush1.bf16.xpose.msra.mxu0 0
        %1013 = vmatprep.subr.bf16.mxu0 0
        %1014 = vmatpush1.bf16.xpose.msra.mxu0 0
        %1015 = vmatprep.subr.bf16.mxu0 0
        %1016 = vmatpush1.bf16.xpose.msra.mxu0 0
        %1017 = vmatprep.subr.bf16.mxu0 0
        %1018 = vmatpush1.bf16.xpose.msra.mxu0 0
        %1019 = vmatprep.mubr.bf16.mxu0 0
        %1020 = vmatmul.mubr.bf16.gmra.mrb[0].mxu0 %v982
        %v1021 = vpop.f32.mrb[0].mxu0
        %v1022 = vadd.f32 0.0, %v1021
        %v1023 = vpop.f32.mrb[0].mxu0
        %v1024 = vpop.f32.mrb[0].mxu0
        %v1025 = vpop.f32.mrb[0].mxu0
        %1026 = vdwg.mxu0
        %v1027 = vmul.f32 %v972, 0.35355338
        %v1028 = vmul.f32 %v1022, 0.35355338
        %v1029 = vadd.f32 %v1027, %v596
        %v1030 = vadd.f32 %v1028, %v600
        %v1031 = vsel %vm704, %v1029, -inf
        %1032 = vmax.xlane.f32.xlu0 %v1031
        %v1033 = vpop.xlane.xlu0 %1032
        %v1034 = vsel %vm704, %v1030, -inf
        %1035 = vmax.xlane.f32.xlu0 %v1034
        %v1036 = vpop.xlane.xlu0 %1035
        %v1037 = vsub.f32 %v1029, %v1033
        %v1038 = vsub.f32 %v1030, %v1036
        %v1039 = vmul.f32 %v1037, 1.442695
        %v1040 = vpow.pop %v1039
        %v1041 = vmul.f32 %v1038, 1.442695
        %v1042 = vpow.pop %v1041
        %v1043 = vsel %vm704, %v1040, 0.0
        %1044 = vadd.xlane.f32.xlu0 %v1043
        %v1045 = vpop.xlane.xlu0 %1044
        %v1046 = vsel %vm704, %v1042, 0.0
        %1047 = vadd.xlane.f32.xlu0 %v1046
        %v1048 = vpop.xlane.xlu0 %1047
        %v1049 = vrcp.pop %v1045
        %v1050 = vrcp.pop %v1048
        %v1051 = vmul.f32 %v1040, %v1049
        %v1052 = vmul.f32 %v1042, %v1050
        %v1053 = vpack.c.bf16 %v1051, %v1051
        %v1054 = vpack.c.bf16 %v1052, %v1052
        %1055 = vrot.lane.b32.xlu0 %v699, 56
        %v1056 = vpop.permute.xlu0 %1055
        %v1058 = vsel %vm704, %v1053, 0
        %v1061 = vsel %vm833, %v1056, 0
        %1063 = vmatprep.subr.bf16.mxu0 0
        %1064 = vmatpush1.bf16.msra.mxu0 %v1061
        %1065 = vmatprep.subr.bf16.mxu0 0
        %1066 = vmatpush1.bf16.msra.mxu0 0
        %1067 = vmatprep.subr.bf16.mxu0 0
        %1068 = vmatpush1.bf16.msra.mxu0 0
        %1069 = vmatprep.subr.bf16.mxu0 0
        %1070 = vmatpush1.bf16.msra.mxu0 0
        %1071 = vmatprep.subr.bf16.mxu0 0
        %1072 = vmatpush1.bf16.msra.mxu0 0
        %1073 = vmatprep.subr.bf16.mxu0 0
        %1074 = vmatpush1.bf16.msra.mxu0 0
        %1075 = vmatprep.subr.bf16.mxu0 0
        %1076 = vmatpush1.bf16.msra.mxu0 0
        %1077 = vmatprep.subr.bf16.mxu0 0
        %1078 = vmatpush1.bf16.msra.mxu0 0
        %1079 = vmatprep.subr.bf16.mxu0 0
        %1080 = vmatpush1.bf16.msra.mxu0 0
        %1081 = vmatprep.subr.bf16.mxu0 0
        %1082 = vmatpush1.bf16.msra.mxu0 0
        %1083 = vmatprep.subr.bf16.mxu0 0
        %1084 = vmatpush1.bf16.msra.mxu0 0
        %1085 = vmatprep.subr.bf16.mxu0 0
        %1086 = vmatpush1.bf16.msra.mxu0 0
        %1087 = vmatprep.subr.bf16.mxu0 0
        %1088 = vmatpush1.bf16.msra.mxu0 0
        %1089 = vmatprep.subr.bf16.mxu0 0
        %1090 = vmatpush1.bf16.msra.mxu0 0
        %1091 = vmatprep.subr.bf16.mxu0 0
        %1092 = vmatpush1.bf16.msra.mxu0 0
        %1093 = vmatprep.subr.bf16.mxu0 0
        %1094 = vmatpush1.bf16.msra.mxu0 0
        %1095 = vmatprep.mubr.bf16.mxu0 0
        %1096 = vmatmul.mubr.bf16.gmra.mrb[0].mxu0 %v1058
        %v1097 = vpop.f32.mrb[0].mxu0
        %v1098 = vadd.f32 0.0, %v1097
        %v1099 = vpop.f32.mrb[0].mxu0
        %v1100 = vpop.f32.mrb[0].mxu0
        %v1101 = vpop.f32.mrb[0].mxu0
        %1102 = vdwg.mxu0
        %1103 = vrot.lane.b32.xlu0 %v700, 56
        %v1104 = vpop.permute.xlu0 %1103
        %v1106 = vsel %vm704, %v1054, 0
        %v1109 = vsel %vm833, %v1104, 0
        %1111 = vmatprep.subr.bf16.mxu0 0
        %1112 = vmatpush1.bf16.msra.mxu0 %v1109
        %1113 = vmatprep.subr.bf16.mxu0 0
        %1114 = vmatpush1.bf16.msra.mxu0 0
        %1115 = vmatprep.subr.bf16.mxu0 0
        %1116 = vmatpush1.bf16.msra.mxu0 0
        %1117 = vmatprep.subr.bf16.mxu0 0
        %1118 = vmatpush1.bf16.msra.mxu0 0
        %1119 = vmatprep.subr.bf16.mxu0 0
        %1120 = vmatpush1.bf16.msra.mxu0 0
        %1121 = vmatprep.subr.bf16.mxu0 0
        %1122 = vmatpush1.bf16.msra.mxu0 0
        %1123 = vmatprep.subr.bf16.mxu0 0
        %1124 = vmatpush1.bf16.msra.mxu0 0
        %1125 = vmatprep.subr.bf16.mxu0 0
        %1126 = vmatpush1.bf16.msra.mxu0 0
        %1127 = vmatprep.subr.bf16.mxu0 0
        %1128 = vmatpush1.bf16.msra.mxu0 0
        %1129 = vmatprep.subr.bf16.mxu0 0
        %1130 = vmatpush1.bf16.msra.mxu0 0
        %1131 = vmatprep.subr.bf16.mxu0 0
        %1132 = vmatpush1.bf16.msra.mxu0 0
        %1133 = vmatprep.subr.bf16.mxu0 0
        %1134 = vmatpush1.bf16.msra.mxu0 0
        %1135 = vmatprep.subr.bf16.mxu0 0
        %1136 = vmatpush1.bf16.msra.mxu0 0
        %1137 = vmatprep.subr.bf16.mxu0 0
        %1138 = vmatpush1.bf16.msra.mxu0 0
        %1139 = vmatprep.subr.bf16.mxu0 0
        %1140 = vmatpush1.bf16.msra.mxu0 0
        %1141 = vmatprep.subr.bf16.mxu0 0
        %1142 = vmatpush1.bf16.msra.mxu0 0
        %1143 = vmatprep.mubr.bf16.mxu0 0
        %1144 = vmatmul.mubr.bf16.gmra.mrb[0].mxu0 %v1106
        %v1145 = vpop.f32.mrb[0].mxu0
        %v1146 = vadd.f32 0.0, %v1145
        %v1147 = vpop.f32.mrb[0].mxu0
        %v1148 = vpop.f32.mrb[0].mxu0
        %v1149 = vpop.f32.mrb[0].mxu0
        %1150 = vdwg.mxu0
        %v1151 = vpack.c.bf16 %v1146, %v1098
        %v1152 = vld [vmem:[%s556 + $0x4] sm:$0xf]
        %v1154 = vsel %vm704, %v1151, 0
        %v1157 = vsel %vm833, %v1152, 0
        %1159 = vmatprep.subr.bf16.mxu0 0
        %1160 = vmatpush1.bf16.msra.mxu0 %v1157
        %1161 = vmatprep.subr.bf16.mxu0 0
        %1162 = vmatpush1.bf16.msra.mxu0 0
        %1163 = vmatprep.subr.bf16.mxu0 0
        %1164 = vmatpush1.bf16.msra.mxu0 0
        %1165 = vmatprep.subr.bf16.mxu0 0
        %1166 = vmatpush1.bf16.msra.mxu0 0
        %1167 = vmatprep.subr.bf16.mxu0 0
        %1168 = vmatpush1.bf16.msra.mxu0 0
        %1169 = vmatprep.subr.bf16.mxu0 0
        %1170 = vmatpush1.bf16.msra.mxu0 0
        %1171 = vmatprep.subr.bf16.mxu0 0
        %1172 = vmatpush1.bf16.msra.mxu0 0
        %1173 = vmatprep.subr.bf16.mxu0 0
        %1174 = vmatpush1.bf16.msra.mxu0 0
        %1175 = vmatprep.subr.bf16.mxu0 0
        %1176 = vmatpush1.bf16.msra.mxu0 0
        %1177 = vmatprep.subr.bf16.mxu0 0
        %1178 = vmatpush1.bf16.msra.mxu0 0
        %1179 = vmatprep.subr.bf16.mxu0 0
        %1180 = vmatpush1.bf16.msra.mxu0 0
        %1181 = vmatprep.subr.bf16.mxu0 0
        %1182 = vmatpush1.bf16.msra.mxu0 0
        %1183 = vmatprep.subr.bf16.mxu0 0
        %1184 = vmatpush1.bf16.msra.mxu0 0
        %1185 = vmatprep.subr.bf16.mxu0 0
        %1186 = vmatpush1.bf16.msra.mxu0 0
        %1187 = vmatprep.subr.bf16.mxu0 0
        %1188 = vmatpush1.bf16.msra.mxu0 0
        %1189 = vmatprep.subr.bf16.mxu0 0
        %1190 = vmatpush1.bf16.msra.mxu0 0
        %1191 = vmatprep.mubr.bf16.mxu0 0
        %1192 = vmatmul.mubr.bf16.gmra.mrb[0].mxu0 %v1154
        %v1193 = vpop.f32.mrb[0].mxu0
        %v1194 = vadd.f32 0.0, %v1193
        %v1195 = vpop.f32.mrb[0].mxu0
        %v1196 = vpop.f32.mrb[0].mxu0
        %v1197 = vadd.f32 0.0, %v1196
        %v1198 = vpop.f32.mrb[0].mxu0
        %1199 = vdwg.mxu0
        %v1201 = vsel %vm704, %v925, 0
        %v1204 = vsel %vm833, %v926, 0
        %1206 = vmatprep.subr.bf16.mxu0 0
        %1207 = vmatpush1.bf16.msra.mxu0 %v1204
        %1208 = vmatprep.subr.bf16.mxu0 0
        %1209 = vmatpush1.bf16.msra.mxu0 0
        %1210 = vmatprep.subr.bf16.mxu0 0
        %1211 = vmatpush1.bf16.msra.mxu0 0
        %1212 = vmatprep.subr.bf16.mxu0 0
        %1213 = vmatpush1.bf16.msra.mxu0 0
        %1214 = vmatprep.subr.bf16.mxu0 0
        %1215 = vmatpush1.bf16.msra.mxu0 0
        %1216 = vmatprep.subr.bf16.mxu0 0
        %1217 = vmatpush1.bf16.msra.mxu0 0
        %1218 = vmatprep.subr.bf16.mxu0 0
        %1219 = vmatpush1.bf16.msra.mxu0 0
        %1220 = vmatprep.subr.bf16.mxu0 0
        %1221 = vmatpush1.bf16.msra.mxu0 0
        %1222 = vmatprep.subr.bf16.mxu0 0
        %1223 = vmatpush1.bf16.msra.mxu0 0
        %1224 = vmatprep.subr.bf16.mxu0 0
        %1225 = vmatpush1.bf16.msra.mxu0 0
        %1226 = vmatprep.subr.bf16.mxu0 0
        %1227 = vmatpush1.bf16.msra.mxu0 0
        %1228 = vmatprep.subr.bf16.mxu0 0
        %1229 = vmatpush1.bf16.msra.mxu0 0
        %1230 = vmatprep.subr.bf16.mxu0 0
        %1231 = vmatpush1.bf16.msra.mxu0 0
        %1232 = vmatprep.subr.bf16.mxu0 0
        %1233 = vmatpush1.bf16.msra.mxu0 0
        %1234 = vmatprep.subr.bf16.mxu0 0
        %1235 = vmatpush1.bf16.msra.mxu0 0
        %1236 = vmatprep.subr.bf16.mxu0 0
        %1237 = vmatpush1.bf16.msra.mxu0 0
        %1238 = vmatprep.mubr.bf16.mxu0 0
        %1239 = vmatmul.mubr.bf16.gmra.mrb[0].mxu0 %v1201
        %v1240 = vpop.f32.mrb[0].mxu0
        %v1241 = vadd.f32 %v1194, %v1240
        %v1242 = vpop.f32.mrb[0].mxu0
        %v1243 = vpop.f32.mrb[0].mxu0
        %v1244 = vadd.f32 %v1197, %v1243
        %v1245 = vpop.f32.mrb[0].mxu0
        %1246 = vdwg.mxu0
        %1247 = vrot.lane.b32.xlu0 %v699, 112
        %v1248 = vpop.permute.xlu0 %1247
        %1249 = vrot.lane.b32.xlu0 %v699, 80
        %v1250 = vpop.permute.xlu0 %1249
        %v1252 = vsel %vm704, %v1248, 0
        %v1255 = vsel %vm704, %v1250, 0
        %1257 = vmatprep.subr.bf16.mxu0 0
        %1258 = vmatpush1.bf16.xpose.msra.mxu0 %v1255
        %1259 = vmatprep.subr.bf16.mxu0 0
        %1260 = vmatpush1.bf16.xpose.msra.mxu0 0
        %1261 = vmatprep.subr.bf16.mxu0 0
        %1262 = vmatpush1.bf16.xpose.msra.mxu0 0
        %1263 = vmatprep.subr.bf16.mxu0 0
        %1264 = vmatpush1.bf16.xpose.msra.mxu0 0
        %1265 = vmatprep.subr.bf16.mxu0 0
        %1266 = vmatpush1.bf16.xpose.msra.mxu0 0
        %1267 = vmatprep.subr.bf16.mxu0 0
        %1268 = vmatpush1.bf16.xpose.msra.mxu0 0
        %1269 = vmatprep.subr.bf16.mxu0 0
        %1270 = vmatpush1.bf16.xpose.msra.mxu0 0
        %1271 = vmatprep.subr.bf16.mxu0 0
        %1272 = vmatpush1.bf16.xpose.msra.mxu0 0
        %1273 = vmatprep.subr.bf16.mxu0 0
        %1274 = vmatpush1.bf16.xpose.msra.mxu0 0
        %1275 = vmatprep.subr.bf16.mxu0 0
        %1276 = vmatpush1.bf16.xpose.msra.mxu0 0
        %1277 = vmatprep.subr.bf16.mxu0 0
        %1278 = vmatpush1.bf16.xpose.msra.mxu0 0
        %1279 = vmatprep.subr.bf16.mxu0 0
        %1280 = vmatpush1.bf16.xpose.msra.mxu0 0
        %1281 = vmatprep.subr.bf16.mxu0 0
        %1282 = vmatpush1.bf16.xpose.msra.mxu0 0
        %1283 = vmatprep.subr.bf16.mxu0 0
        %1284 = vmatpush1.bf16.xpose.msra.mxu0 0
        %1285 = vmatprep.subr.bf16.mxu0 0
        %1286 = vmatpush1.bf16.xpose.msra.mxu0 0
        %1287 = vmatprep.subr.bf16.mxu0 0
        %1288 = vmatpush1.bf16.xpose.msra.mxu0 0
        %1289 = vmatprep.mubr.bf16.mxu0 0
        %1290 = vmatmul.mubr.bf16.gmra.mrb[0].mxu0 %v1252
        %v1291 = vpop.f32.mrb[0].mxu0
        %v1292 = vadd.f32 0.0, %v1291
        %v1293 = vpop.f32.mrb[0].mxu0
        %v1294 = vpop.f32.mrb[0].mxu0
        %v1295 = vpop.f32.mrb[0].mxu0
        %1296 = vdwg.mxu0
        %1297 = vrot.lane.b32.xlu0 %v700, 112
        %v1298 = vpop.permute.xlu0 %1297
        %1299 = vrot.lane.b32.xlu0 %v700, 80
        %v1300 = vpop.permute.xlu0 %1299
        %v1302 = vsel %vm704, %v1298, 0
        %v1305 = vsel %vm704, %v1300, 0
        %1307 = vmatprep.subr.bf16.mxu0 0
        %1308 = vmatpush1.bf16.xpose.msra.mxu0 %v1305
        %1309 = vmatprep.subr.bf16.mxu0 0
        %1310 = vmatpush1.bf16.xpose.msra.mxu0 0
        %1311 = vmatprep.subr.bf16.mxu0 0
        %1312 = vmatpush1.bf16.xpose.msra.mxu0 0
        %1313 = vmatprep.subr.bf16.mxu0 0
        %1314 = vmatpush1.bf16.xpose.msra.mxu0 0
        %1315 = vmatprep.subr.bf16.mxu0 0
        %1316 = vmatpush1.bf16.xpose.msra.mxu0 0
        %1317 = vmatprep.subr.bf16.mxu0 0
        %1318 = vmatpush1.bf16.xpose.msra.mxu0 0
        %1319 = vmatprep.subr.bf16.mxu0 0
        %1320 = vmatpush1.bf16.xpose.msra.mxu0 0
        %1321 = vmatprep.subr.bf16.mxu0 0
        %1322 = vmatpush1.bf16.xpose.msra.mxu0 0
        %1323 = vmatprep.subr.bf16.mxu0 0
        %1324 = vmatpush1.bf16.xpose.msra.mxu0 0
        %1325 = vmatprep.subr.bf16.mxu0 0
        %1326 = vmatpush1.bf16.xpose.msra.mxu0 0
        %1327 = vmatprep.subr.bf16.mxu0 0
        %1328 = vmatpush1.bf16.xpose.msra.mxu0 0
        %1329 = vmatprep.subr.bf16.mxu0 0
        %1330 = vmatpush1.bf16.xpose.msra.mxu0 0
        %1331 = vmatprep.subr.bf16.mxu0 0
        %1332 = vmatpush1.bf16.xpose.msra.mxu0 0
        %1333 = vmatprep.subr.bf16.mxu0 0
        %1334 = vmatpush1.bf16.xpose.msra.mxu0 0
        %1335 = vmatprep.subr.bf16.mxu0 0
        %1336 = vmatpush1.bf16.xpose.msra.mxu0 0
        %1337 = vmatprep.subr.bf16.mxu0 0
        %1338 = vmatpush1.bf16.xpose.msra.mxu0 0
        %1339 = vmatprep.mubr.bf16.mxu0 0
        %1340 = vmatmul.mubr.bf16.gmra.mrb[0].mxu0 %v1302
        %v1341 = vpop.f32.mrb[0].mxu0
        %v1342 = vadd.f32 0.0, %v1341
        %v1343 = vpop.f32.mrb[0].mxu0
        %v1344 = vpop.f32.mrb[0].mxu0
        %v1345 = vpop.f32.mrb[0].mxu0
        %1346 = vdwg.mxu0
        %v1347 = vmul.f32 %v1292, 0.35355338
        %v1348 = vmul.f32 %v1342, 0.35355338
        %v1349 = vadd.f32 %v1347, %v596
        %v1350 = vadd.f32 %v1348, %v600
        %v1351 = vsel %vm704, %v1349, -inf
        %1352 = vmax.xlane.f32.xlu0 %v1351
        %v1353 = vpop.xlane.xlu0 %1352
        %v1354 = vsel %vm704, %v1350, -inf
        %1355 = vmax.xlane.f32.xlu0 %v1354
        %v1356 = vpop.xlane.xlu0 %1355
        %v1357 = vsub.f32 %v1349, %v1353
        %v1358 = vsub.f32 %v1350, %v1356
        %v1359 = vmul.f32 %v1357, 1.442695
        %v1360 = vpow.pop %v1359
        %v1361 = vmul.f32 %v1358, 1.442695
        %v1362 = vpow.pop %v1361
        %v1363 = vsel %vm704, %v1360, 0.0
        %1364 = vadd.xlane.f32.xlu0 %v1363
        %v1365 = vpop.xlane.xlu0 %1364
        %v1366 = vsel %vm704, %v1362, 0.0
        %1367 = vadd.xlane.f32.xlu0 %v1366
        %v1368 = vpop.xlane.xlu0 %1367
        %v1369 = vrcp.pop %v1365
        %v1370 = vrcp.pop %v1368
        %v1371 = vmul.f32 %v1360, %v1369
        %v1372 = vmul.f32 %v1362, %v1370
        %v1373 = vpack.c.bf16 %v1371, %v1371
        %v1374 = vpack.c.bf16 %v1372, %v1372
        %1375 = vrot.lane.b32.xlu0 %v699, 48
        %v1376 = vpop.permute.xlu0 %1375
        %v1378 = vsel %vm704, %v1373, 0
        %v1381 = vsel %vm833, %v1376, 0
        %1383 = vmatprep.subr.bf16.mxu0 0
        %1384 = vmatpush1.bf16.msra.mxu0 %v1381
        %1385 = vmatprep.subr.bf16.mxu0 0
        %1386 = vmatpush1.bf16.msra.mxu0 0
        %1387 = vmatprep.subr.bf16.mxu0 0
        %1388 = vmatpush1.bf16.msra.mxu0 0
        %1389 = vmatprep.subr.bf16.mxu0 0
        %1390 = vmatpush1.bf16.msra.mxu0 0
        %1391 = vmatprep.subr.bf16.mxu0 0
        %1392 = vmatpush1.bf16.msra.mxu0 0
        %1393 = vmatprep.subr.bf16.mxu0 0
        %1394 = vmatpush1.bf16.msra.mxu0 0
        %1395 = vmatprep.subr.bf16.mxu0 0
        %1396 = vmatpush1.bf16.msra.mxu0 0
        %1397 = vmatprep.subr.bf16.mxu0 0
        %1398 = vmatpush1.bf16.msra.mxu0 0
        %1399 = vmatprep.subr.bf16.mxu0 0
        %1400 = vmatpush1.bf16.msra.mxu0 0
        %1401 = vmatprep.subr.bf16.mxu0 0
        %1402 = vmatpush1.bf16.msra.mxu0 0
        %1403 = vmatprep.subr.bf16.mxu0 0
        %1404 = vmatpush1.bf16.msra.mxu0 0
        %1405 = vmatprep.subr.bf16.mxu0 0
        %1406 = vmatpush1.bf16.msra.mxu0 0
        %1407 = vmatprep.subr.bf16.mxu0 0
        %1408 = vmatpush1.bf16.msra.mxu0 0
        %1409 = vmatprep.subr.bf16.mxu0 0
        %1410 = vmatpush1.bf16.msra.mxu0 0
        %1411 = vmatprep.subr.bf16.mxu0 0
        %1412 = vmatpush1.bf16.msra.mxu0 0
        %1413 = vmatprep.subr.bf16.mxu0 0
        %1414 = vmatpush1.bf16.msra.mxu0 0
        %1415 = vmatprep.mubr.bf16.mxu0 0
        %1416 = vmatmul.mubr.bf16.gmra.mrb[0].mxu0 %v1378
        %v1417 = vpop.f32.mrb[0].mxu0
        %v1418 = vadd.f32 0.0, %v1417
        %v1419 = vpop.f32.mrb[0].mxu0
        %v1420 = vpop.f32.mrb[0].mxu0
        %v1421 = vpop.f32.mrb[0].mxu0
        %1422 = vdwg.mxu0
        %1423 = vrot.lane.b32.xlu0 %v700, 48
        %v1424 = vpop.permute.xlu0 %1423
        %v1426 = vsel %vm704, %v1374, 0
        %v1429 = vsel %vm833, %v1424, 0
        %1431 = vmatprep.subr.bf16.mxu0 0
        %1432 = vmatpush1.bf16.msra.mxu0 %v1429
        %1433 = vmatprep.subr.bf16.mxu0 0
        %1434 = vmatpush1.bf16.msra.mxu0 0
        %1435 = vmatprep.subr.bf16.mxu0 0
        %1436 = vmatpush1.bf16.msra.mxu0 0
        %1437 = vmatprep.subr.bf16.mxu0 0
        %1438 = vmatpush1.bf16.msra.mxu0 0
        %1439 = vmatprep.subr.bf16.mxu0 0
        %1440 = vmatpush1.bf16.msra.mxu0 0
        %1441 = vmatprep.subr.bf16.mxu0 0
        %1442 = vmatpush1.bf16.msra.mxu0 0
        %1443 = vmatprep.subr.bf16.mxu0 0
        %1444 = vmatpush1.bf16.msra.mxu0 0
        %1445 = vmatprep.subr.bf16.mxu0 0
        %1446 = vmatpush1.bf16.msra.mxu0 0
        %1447 = vmatprep.subr.bf16.mxu0 0
        %1448 = vmatpush1.bf16.msra.mxu0 0
        %1449 = vmatprep.subr.bf16.mxu0 0
        %1450 = vmatpush1.bf16.msra.mxu0 0
        %1451 = vmatprep.subr.bf16.mxu0 0
        %1452 = vmatpush1.bf16.msra.mxu0 0
        %1453 = vmatprep.subr.bf16.mxu0 0
        %1454 = vmatpush1.bf16.msra.mxu0 0
        %1455 = vmatprep.subr.bf16.mxu0 0
        %1456 = vmatpush1.bf16.msra.mxu0 0
        %1457 = vmatprep.subr.bf16.mxu0 0
        %1458 = vmatpush1.bf16.msra.mxu0 0
        %1459 = vmatprep.subr.bf16.mxu0 0
        %1460 = vmatpush1.bf16.msra.mxu0 0
        %1461 = vmatprep.subr.bf16.mxu0 0
        %1462 = vmatpush1.bf16.msra.mxu0 0
        %1463 = vmatprep.mubr.bf16.mxu0 0
        %1464 = vmatmul.mubr.bf16.gmra.mrb[0].mxu0 %v1426
        %v1465 = vpop.f32.mrb[0].mxu0
        %v1466 = vadd.f32 0.0, %v1465
        %v1467 = vpop.f32.mrb[0].mxu0
        %v1468 = vpop.f32.mrb[0].mxu0
        %v1469 = vpop.f32.mrb[0].mxu0
        %1470 = vdwg.mxu0
        %v1471 = vpack.c.bf16 %v1466, %v1418
        %v1472 = vld [vmem:[%s556 + $0x8] sm:$0xf]
        %v1474 = vsel %vm704, %v1471, 0
        %v1477 = vsel %vm833, %v1472, 0
        %1479 = vmatprep.subr.bf16.mxu0 0
        %1480 = vmatpush1.bf16.msra.mxu0 %v1477
        %1481 = vmatprep.subr.bf16.mxu0 0
        %1482 = vmatpush1.bf16.msra.mxu0 0
        %1483 = vmatprep.subr.bf16.mxu0 0
        %1484 = vmatpush1.bf16.msra.mxu0 0
        %1485 = vmatprep.subr.bf16.mxu0 0
        %1486 = vmatpush1.bf16.msra.mxu0 0
        %1487 = vmatprep.subr.bf16.mxu0 0
        %1488 = vmatpush1.bf16.msra.mxu0 0
        %1489 = vmatprep.subr.bf16.mxu0 0
        %1490 = vmatpush1.bf16.msra.mxu0 0
        %1491 = vmatprep.subr.bf16.mxu0 0
        %1492 = vmatpush1.bf16.msra.mxu0 0
        %1493 = vmatprep.subr.bf16.mxu0 0
        %1494 = vmatpush1.bf16.msra.mxu0 0
        %1495 = vmatprep.subr.bf16.mxu0 0
        %1496 = vmatpush1.bf16.msra.mxu0 0
        %1497 = vmatprep.subr.bf16.mxu0 0
        %1498 = vmatpush1.bf16.msra.mxu0 0
        %1499 = vmatprep.subr.bf16.mxu0 0
        %1500 = vmatpush1.bf16.msra.mxu0 0
        %1501 = vmatprep.subr.bf16.mxu0 0
        %1502 = vmatpush1.bf16.msra.mxu0 0
        %1503 = vmatprep.subr.bf16.mxu0 0
        %1504 = vmatpush1.bf16.msra.mxu0 0
        %1505 = vmatprep.subr.bf16.mxu0 0
        %1506 = vmatpush1.bf16.msra.mxu0 0
        %1507 = vmatprep.subr.bf16.mxu0 0
        %1508 = vmatpush1.bf16.msra.mxu0 0
        %1509 = vmatprep.subr.bf16.mxu0 0
        %1510 = vmatpush1.bf16.msra.mxu0 0
        %1511 = vmatprep.mubr.bf16.mxu0 0
        %1512 = vmatmul.mubr.bf16.gmra.mrb[0].mxu0 %v1474
        %v1513 = vpop.f32.mrb[0].mxu0
        %v1514 = vadd.f32 0.0, %v1513
        %v1515 = vpop.f32.mrb[0].mxu0
        %v1516 = vpop.f32.mrb[0].mxu0
        %v1517 = vadd.f32 0.0, %v1516
        %v1518 = vpop.f32.mrb[0].mxu0
        %1519 = vdwg.mxu0
        %v1520 = vadd.f32 %v1241, %v1514
        %v1521 = vadd.f32 %v1244, %v1517
        %1522 = vrot.lane.b32.xlu0 %v699, 104
        %v1523 = vpop.permute.xlu0 %1522
        %1524 = vrot.lane.b32.xlu0 %v699, 72
        %v1525 = vpop.permute.xlu0 %1524
        %v1527 = vsel %vm704, %v1523, 0
        %v1530 = vsel %vm704, %v1525, 0
        %1532 = vmatprep.subr.bf16.mxu0 0
        %1533 = vmatpush1.bf16.xpose.msra.mxu0 %v1530
        %1534 = vmatprep.subr.bf16.mxu0 0
        %1535 = vmatpush1.bf16.xpose.msra.mxu0 0
        %1536 = vmatprep.subr.bf16.mxu0 0
        %1537 = vmatpush1.bf16.xpose.msra.mxu0 0
        %1538 = vmatprep.subr.bf16.mxu0 0
        %1539 = vmatpush1.bf16.xpose.msra.mxu0 0
        %1540 = vmatprep.subr.bf16.mxu0 0
        %1541 = vmatpush1.bf16.xpose.msra.mxu0 0
        %1542 = vmatprep.subr.bf16.mxu0 0
        %1543 = vmatpush1.bf16.xpose.msra.mxu0 0
        %1544 = vmatprep.subr.bf16.mxu0 0
        %1545 = vmatpush1.bf16.xpose.msra.mxu0 0
        %1546 = vmatprep.subr.bf16.mxu0 0
        %1547 = vmatpush1.bf16.xpose.msra.mxu0 0
        %1548 = vmatprep.subr.bf16.mxu0 0
        %1549 = vmatpush1.bf16.xpose.msra.mxu0 0
        %1550 = vmatprep.subr.bf16.mxu0 0
        %1551 = vmatpush1.bf16.xpose.msra.mxu0 0
        %1552 = vmatprep.subr.bf16.mxu0 0
        %1553 = vmatpush1.bf16.xpose.msra.mxu0 0
        %1554 = vmatprep.subr.bf16.mxu0 0
        %1555 = vmatpush1.bf16.xpose.msra.mxu0 0
        %1556 = vmatprep.subr.bf16.mxu0 0
        %1557 = vmatpush1.bf16.xpose.msra.mxu0 0
        %1558 = vmatprep.subr.bf16.mxu0 0
        %1559 = vmatpush1.bf16.xpose.msra.mxu0 0
        %1560 = vmatprep.subr.bf16.mxu0 0
        %1561 = vmatpush1.bf16.xpose.msra.mxu0 0
        %1562 = vmatprep.subr.bf16.mxu0 0
        %1563 = vmatpush1.bf16.xpose.msra.mxu0 0
        %1564 = vmatprep.mubr.bf16.mxu0 0
        %1565 = vmatmul.mubr.bf16.gmra.mrb[0].mxu0 %v1527
        %v1566 = vpop.f32.mrb[0].mxu0
        %v1567 = vadd.f32 0.0, %v1566
        %v1568 = vpop.f32.mrb[0].mxu0
        %v1569 = vpop.f32.mrb[0].mxu0
        %v1570 = vpop.f32.mrb[0].mxu0
        %1571 = vdwg.mxu0
        %1572 = vrot.lane.b32.xlu0 %v700, 104
        %v1573 = vpop.permute.xlu0 %1572
        %1574 = vrot.lane.b32.xlu0 %v700, 72
        %v1575 = vpop.permute.xlu0 %1574
        %v1577 = vsel %vm704, %v1573, 0
        %v1580 = vsel %vm704, %v1575, 0
        %1582 = vmatprep.subr.bf16.mxu0 0
        %1583 = vmatpush1.bf16.xpose.msra.mxu0 %v1580
        %1584 = vmatprep.subr.bf16.mxu0 0
        %1585 = vmatpush1.bf16.xpose.msra.mxu0 0
        %1586 = vmatprep.subr.bf16.mxu0 0
        %1587 = vmatpush1.bf16.xpose.msra.mxu0 0
        %1588 = vmatprep.subr.bf16.mxu0 0
        %1589 = vmatpush1.bf16.xpose.msra.mxu0 0
        %1590 = vmatprep.subr.bf16.mxu0 0
        %1591 = vmatpush1.bf16.xpose.msra.mxu0 0
        %1592 = vmatprep.subr.bf16.mxu0 0
        %1593 = vmatpush1.bf16.xpose.msra.mxu0 0
        %1594 = vmatprep.subr.bf16.mxu0 0
        %1595 = vmatpush1.bf16.xpose.msra.mxu0 0
        %1596 = vmatprep.subr.bf16.mxu0 0
        %1597 = vmatpush1.bf16.xpose.msra.mxu0 0
        %1598 = vmatprep.subr.bf16.mxu0 0
        %1599 = vmatpush1.bf16.xpose.msra.mxu0 0
        %1600 = vmatprep.subr.bf16.mxu0 0
        %1601 = vmatpush1.bf16.xpose.msra.mxu0 0
        %1602 = vmatprep.subr.bf16.mxu0 0
        %1603 = vmatpush1.bf16.xpose.msra.mxu0 0
        %1604 = vmatprep.subr.bf16.mxu0 0
        %1605 = vmatpush1.bf16.xpose.msra.mxu0 0
        %1606 = vmatprep.subr.bf16.mxu0 0
        %1607 = vmatpush1.bf16.xpose.msra.mxu0 0
        %1608 = vmatprep.subr.bf16.mxu0 0
        %1609 = vmatpush1.bf16.xpose.msra.mxu0 0
        %1610 = vmatprep.subr.bf16.mxu0 0
        %1611 = vmatpush1.bf16.xpose.msra.mxu0 0
        %1612 = vmatprep.subr.bf16.mxu0 0
        %1613 = vmatpush1.bf16.xpose.msra.mxu0 0
        %1614 = vmatprep.mubr.bf16.mxu0 0
        %1615 = vmatmul.mubr.bf16.gmra.mrb[0].mxu0 %v1577
        %v1616 = vpop.f32.mrb[0].mxu0
        %v1617 = vadd.f32 0.0, %v1616
        %v1618 = vpop.f32.mrb[0].mxu0
        %v1619 = vpop.f32.mrb[0].mxu0
        %v1620 = vpop.f32.mrb[0].mxu0
        %1621 = vdwg.mxu0
        %v1622 = vmul.f32 %v1567, 0.35355338
        %v1623 = vmul.f32 %v1617, 0.35355338
        %v1624 = vadd.f32 %v1622, %v596
        %v1625 = vadd.f32 %v1623, %v600
        %v1626 = vsel %vm704, %v1624, -inf
        %1627 = vmax.xlane.f32.xlu0 %v1626
        %v1628 = vpop.xlane.xlu0 %1627
        %v1629 = vsel %vm704, %v1625, -inf
        %1630 = vmax.xlane.f32.xlu0 %v1629
        %v1631 = vpop.xlane.xlu0 %1630
        %v1632 = vsub.f32 %v1624, %v1628
        %v1633 = vsub.f32 %v1625, %v1631
        %v1634 = vmul.f32 %v1632, 1.442695
        %v1635 = vpow.pop %v1634
        %v1636 = vmul.f32 %v1633, 1.442695
        %v1637 = vpow.pop %v1636
        %v1638 = vsel %vm704, %v1635, 0.0
        %1639 = vadd.xlane.f32.xlu0 %v1638
        %v1640 = vpop.xlane.xlu0 %1639
        %v1641 = vsel %vm704, %v1637, 0.0
        %1642 = vadd.xlane.f32.xlu0 %v1641
        %v1643 = vpop.xlane.xlu0 %1642
        %v1644 = vrcp.pop %v1640
        %v1645 = vrcp.pop %v1643
        %v1646 = vmul.f32 %v1635, %v1644
        %v1647 = vmul.f32 %v1637, %v1645
        %v1648 = vpack.c.bf16 %v1646, %v1646
        %v1649 = vpack.c.bf16 %v1647, %v1647
        %1650 = vrot.lane.b32.xlu0 %v699, 40
        %v1651 = vpop.permute.xlu0 %1650
        %v1653 = vsel %vm704, %v1648, 0
        %v1656 = vsel %vm833, %v1651, 0
        %1658 = vmatprep.subr.bf16.mxu0 0
        %1659 = vmatpush1.bf16.msra.mxu0 %v1656
        %1660 = vmatprep.subr.bf16.mxu0 0
        %1661 = vmatpush1.bf16.msra.mxu0 0
        %1662 = vmatprep.subr.bf16.mxu0 0
        %1663 = vmatpush1.bf16.msra.mxu0 0
        %1664 = vmatprep.subr.bf16.mxu0 0
        %1665 = vmatpush1.bf16.msra.mxu0 0
        %1666 = vmatprep.subr.bf16.mxu0 0
        %1667 = vmatpush1.bf16.msra.mxu0 0
        %1668 = vmatprep.subr.bf16.mxu0 0
        %1669 = vmatpush1.bf16.msra.mxu0 0
        %1670 = vmatprep.subr.bf16.mxu0 0
        %1671 = vmatpush1.bf16.msra.mxu0 0
        %1672 = vmatprep.subr.bf16.mxu0 0
        %1673 = vmatpush1.bf16.msra.mxu0 0
        %1674 = vmatprep.subr.bf16.mxu0 0
        %1675 = vmatpush1.bf16.msra.mxu0 0
        %1676 = vmatprep.subr.bf16.mxu0 0
        %1677 = vmatpush1.bf16.msra.mxu0 0
        %1678 = vmatprep.subr.bf16.mxu0 0
        %1679 = vmatpush1.bf16.msra.mxu0 0
        %1680 = vmatprep.subr.bf16.mxu0 0
        %1681 = vmatpush1.bf16.msra.mxu0 0
        %1682 = vmatprep.subr.bf16.mxu0 0
        %1683 = vmatpush1.bf16.msra.mxu0 0
        %1684 = vmatprep.subr.bf16.mxu0 0
        %1685 = vmatpush1.bf16.msra.mxu0 0
        %1686 = vmatprep.subr.bf16.mxu0 0
        %1687 = vmatpush1.bf16.msra.mxu0 0
        %1688 = vmatprep.subr.bf16.mxu0 0
        %1689 = vmatpush1.bf16.msra.mxu0 0
        %1690 = vmatprep.mubr.bf16.mxu0 0
        %1691 = vmatmul.mubr.bf16.gmra.mrb[0].mxu0 %v1653
        %v1692 = vpop.f32.mrb[0].mxu0
        %v1693 = vadd.f32 0.0, %v1692
        %v1694 = vpop.f32.mrb[0].mxu0
        %v1695 = vpop.f32.mrb[0].mxu0
        %v1696 = vpop.f32.mrb[0].mxu0
        %1697 = vdwg.mxu0
        %1698 = vrot.lane.b32.xlu0 %v700, 40
        %v1699 = vpop.permute.xlu0 %1698
        %v1701 = vsel %vm704, %v1649, 0
        %v1704 = vsel %vm833, %v1699, 0
        %1706 = vmatprep.subr.bf16.mxu0 0
        %1707 = vmatpush1.bf16.msra.mxu0 %v1704
        %1708 = vmatprep.subr.bf16.mxu0 0
        %1709 = vmatpush1.bf16.msra.mxu0 0
        %1710 = vmatprep.subr.bf16.mxu0 0
        %1711 = vmatpush1.bf16.msra.mxu0 0
        %1712 = vmatprep.subr.bf16.mxu0 0
        %1713 = vmatpush1.bf16.msra.mxu0 0
        %1714 = vmatprep.subr.bf16.mxu0 0
        %1715 = vmatpush1.bf16.msra.mxu0 0
        %1716 = vmatprep.subr.bf16.mxu0 0
        %1717 = vmatpush1.bf16.msra.mxu0 0
        %1718 = vmatprep.subr.bf16.mxu0 0
        %1719 = vmatpush1.bf16.msra.mxu0 0
        %1720 = vmatprep.subr.bf16.mxu0 0
        %1721 = vmatpush1.bf16.msra.mxu0 0
        %1722 = vmatprep.subr.bf16.mxu0 0
        %1723 = vmatpush1.bf16.msra.mxu0 0
        %1724 = vmatprep.subr.bf16.mxu0 0
        %1725 = vmatpush1.bf16.msra.mxu0 0
        %1726 = vmatprep.subr.bf16.mxu0 0
        %1727 = vmatpush1.bf16.msra.mxu0 0
        %1728 = vmatprep.subr.bf16.mxu0 0
        %1729 = vmatpush1.bf16.msra.mxu0 0
        %1730 = vmatprep.subr.bf16.mxu0 0
        %1731 = vmatpush1.bf16.msra.mxu0 0
        %1732 = vmatprep.subr.bf16.mxu0 0
        %1733 = vmatpush1.bf16.msra.mxu0 0
        %1734 = vmatprep.subr.bf16.mxu0 0
        %1735 = vmatpush1.bf16.msra.mxu0 0
        %1736 = vmatprep.subr.bf16.mxu0 0
        %1737 = vmatpush1.bf16.msra.mxu0 0
        %1738 = vmatprep.mubr.bf16.mxu0 0
        %1739 = vmatmul.mubr.bf16.gmra.mrb[0].mxu0 %v1701
        %v1740 = vpop.f32.mrb[0].mxu0
        %v1741 = vadd.f32 0.0, %v1740
        %v1742 = vpop.f32.mrb[0].mxu0
        %v1743 = vpop.f32.mrb[0].mxu0
        %v1744 = vpop.f32.mrb[0].mxu0
        %1745 = vdwg.mxu0
        %v1746 = vpack.c.bf16 %v1741, %v1693
        %v1747 = vld [vmem:[%s556 + $0xc] sm:$0xf]
        %v1749 = vsel %vm704, %v1746, 0
        %v1752 = vsel %vm833, %v1747, 0
        %1754 = vmatprep.subr.bf16.mxu0 0
        %1755 = vmatpush1.bf16.msra.mxu0 %v1752
        %1756 = vmatprep.subr.bf16.mxu0 0
        %1757 = vmatpush1.bf16.msra.mxu0 0
        %1758 = vmatprep.subr.bf16.mxu0 0
        %1759 = vmatpush1.bf16.msra.mxu0 0
        %1760 = vmatprep.subr.bf16.mxu0 0
        %1761 = vmatpush1.bf16.msra.mxu0 0
        %1762 = vmatprep.subr.bf16.mxu0 0
        %1763 = vmatpush1.bf16.msra.mxu0 0
        %1764 = vmatprep.subr.bf16.mxu0 0
        %1765 = vmatpush1.bf16.msra.mxu0 0
        %1766 = vmatprep.subr.bf16.mxu0 0
        %1767 = vmatpush1.bf16.msra.mxu0 0
        %1768 = vmatprep.subr.bf16.mxu0 0
        %1769 = vmatpush1.bf16.msra.mxu0 0
        %1770 = vmatprep.subr.bf16.mxu0 0
        %1771 = vmatpush1.bf16.msra.mxu0 0
        %1772 = vmatprep.subr.bf16.mxu0 0
        %1773 = vmatpush1.bf16.msra.mxu0 0
        %1774 = vmatprep.subr.bf16.mxu0 0
        %1775 = vmatpush1.bf16.msra.mxu0 0
        %1776 = vmatprep.subr.bf16.mxu0 0
        %1777 = vmatpush1.bf16.msra.mxu0 0
        %1778 = vmatprep.subr.bf16.mxu0 0
        %1779 = vmatpush1.bf16.msra.mxu0 0
        %1780 = vmatprep.subr.bf16.mxu0 0
        %1781 = vmatpush1.bf16.msra.mxu0 0
        %1782 = vmatprep.subr.bf16.mxu0 0
        %1783 = vmatpush1.bf16.msra.mxu0 0
        %1784 = vmatprep.subr.bf16.mxu0 0
        %1785 = vmatpush1.bf16.msra.mxu0 0
        %1786 = vmatprep.mubr.bf16.mxu0 0
        %1787 = vmatmul.mubr.bf16.gmra.mrb[0].mxu0 %v1749
        %v1788 = vpop.f32.mrb[0].mxu0
        %v1789 = vadd.f32 0.0, %v1788
        %v1790 = vpop.f32.mrb[0].mxu0
        %v1791 = vpop.f32.mrb[0].mxu0
        %v1792 = vadd.f32 0.0, %v1791
        %v1793 = vpop.f32.mrb[0].mxu0
        %1794 = vdwg.mxu0
        %v1795 = vadd.f32 %v1520, %v1789
        %v1796 = vadd.f32 %v1521, %v1792
        %v1797 = vld [vmem:[%s559] sm:$0x1]
        %v1799 = vlaneseq
        %v1800 = vshrl.u32 %v1799, 7
        %v1801 = vsub.s32 0, %v1800
        %v1802 = vrot.slane %v1797, %v1801
        %v1804 = vadd.f32 %v1795, %v1802
        %v1805 = vadd.f32 %v1796, %v1802
        %v1806 = vadd.f32 %v587, %v1804
        %v1807 = vadd.f32 %v588, %v1805
        %v1808 = vsel %vm603, %v1806, 0.0
        %1809 = vadd.xlane.f32.xlu0 %v1808
        %v1810 = vpop.xlane.xlu0 %1809
        %v1811 = vsel %vm603, %v1807, 0.0
        %1812 = vadd.xlane.f32.xlu0 %v1811
        %v1813 = vpop.xlane.xlu0 %1812
        %v1814 = vmul.f32 %v1810, %v610
        %v1815 = vmul.f32 %v1813, %v610
        %v1816 = vsub.f32 %v1806, %v1814
        %v1817 = vsub.f32 %v1807, %v1815
        %v1818 = vmul.f32 %v1816, %v1816
        %v1819 = vmul.f32 %v1817, %v1817
        %v1820 = vsel %vm603, %v1818, 0.0
        %1821 = vadd.xlane.f32.xlu0 %v1820
        %v1822 = vpop.xlane.xlu0 %1821
        %v1823 = vsel %vm603, %v1819, 0.0
        %1824 = vadd.xlane.f32.xlu0 %v1823
        %v1825 = vpop.xlane.xlu0 %1824
        %v1826 = vmul.f32 %v1822, %v610
        %v1827 = vmul.f32 %v1825, %v610
        %v1828 = vadd.f32 %v1826, 1e-05
        %v1829 = vadd.f32 %v1827, 1e-05
        %v1830 = vrsqrt.pop %v1828
        %v1831 = vrsqrt.pop %v1829
        %v1832 = vmul.f32 %v1816, %v1830
        %v1833 = vmul.f32 %v1817, %v1831
        %v1834 = vpack.c.bf16 %v1833, %v1832
        %v1835 = vld [vmem:[%s564] sm:$0xf]
        %v1836 = vld [vmem:[%s564 + $0x4] sm:$0xf]
        %v1837 = vld [vmem:[%s564 + $0x8] sm:$0xf]
        %v1838 = vld [vmem:[%s564 + $0xc] sm:$0xf]
        %v1839 = vld [vmem:[%s567] sm:$0x1]
        %v1841 = vlaneseq
        %v1842 = vshrl.u32 %v1841, 7
        %v1843 = vsub.s32 0, %v1842
        %v1844 = vrot.slane %v1839, %v1843
        %v1850 = vunpack.c.l.b16 %v1835
        %v1851 = vunpack.c.l.b16 %v1836
        %v1852 = vunpack.c.l.b16 %v1837
        %v1853 = vunpack.c.l.b16 %v1838
        %v1854 = vpack.c.b16 %v1851, %v1850
        %v1855 = vpack.c.b16 %v1853, %v1852
        %v1859 = vsel %vm603, %v1834, 0
        %1861 = vmatprep.subr.bf16.mxu0 0
        %1862 = vmatpush1.bf16.msra.mxu0 %v1854
        %1863 = vmatprep.subr.bf16.mxu0 0
        %1864 = vmatpush1.bf16.msra.mxu0 %v1855
        %1865 = vmatprep.subr.bf16.mxu0 0
        %1866 = vmatpush1.bf16.msra.mxu0 0
        %1867 = vmatprep.subr.bf16.mxu0 0
        %1868 = vmatpush1.bf16.msra.mxu0 0
        %1869 = vmatprep.subr.bf16.mxu0 0
        %1870 = vmatpush1.bf16.msra.mxu0 0
        %1871 = vmatprep.subr.bf16.mxu0 0
        %1872 = vmatpush1.bf16.msra.mxu0 0
        %1873 = vmatprep.subr.bf16.mxu0 0
        %1874 = vmatpush1.bf16.msra.mxu0 0
        %1875 = vmatprep.subr.bf16.mxu0 0
        %1876 = vmatpush1.bf16.msra.mxu0 0
        %1877 = vmatprep.subr.bf16.mxu0 0
        %1878 = vmatpush1.bf16.msra.mxu0 0
        %1879 = vmatprep.subr.bf16.mxu0 0
        %1880 = vmatpush1.bf16.msra.mxu0 0
        %1881 = vmatprep.subr.bf16.mxu0 0
        %1882 = vmatpush1.bf16.msra.mxu0 0
        %1883 = vmatprep.subr.bf16.mxu0 0
        %1884 = vmatpush1.bf16.msra.mxu0 0
        %1885 = vmatprep.subr.bf16.mxu0 0
        %1886 = vmatpush1.bf16.msra.mxu0 0
        %1887 = vmatprep.subr.bf16.mxu0 0
        %1888 = vmatpush1.bf16.msra.mxu0 0
        %1889 = vmatprep.subr.bf16.mxu0 0
        %1890 = vmatpush1.bf16.msra.mxu0 0
        %1891 = vmatprep.subr.bf16.mxu0 0
        %1892 = vmatpush1.bf16.msra.mxu0 0
        %1893 = vmatprep.mubr.bf16.mxu0 0
        %1894 = vmatmul.mubr.bf16.gmra.mrb[0].mxu0 %v1859
        %v1895 = vpop.f32.mrb[0].mxu0
        %v1896 = vadd.f32 %v1844, %v1895
        %v1897 = vpop.f32.mrb[0].mxu0
        %v1898 = vpop.f32.mrb[0].mxu0
        %v1899 = vadd.f32 %v1844, %v1898
        %v1900 = vpop.f32.mrb[0].mxu0
        %1901 = vdwg.mxu0
        %v1902 = vmax.f32 %v1896, 0.0
        %v1903 = vmax.f32 %v1899, 0.0
        %v1904 = vpack.c.bf16 %v1903, %v1902
        %v1905 = vld [vmem:[%s572] sm:$0xf]
        %v1906 = vld [vmem:[%s572 + $0x4] sm:$0xf]
        %v1907 = vld [vmem:[%s572 + $0x8] sm:$0xf]
        %v1908 = vld [vmem:[%s572 + $0xc] sm:$0xf]
        %v1909 = vld [vmem:[%s572 + $0x10] sm:$0xf]
        %v1910 = vld [vmem:[%s572 + $0x14] sm:$0xf]
        %v1911 = vld [vmem:[%s572 + $0x18] sm:$0xf]
        %v1912 = vld [vmem:[%s572 + $0x1c] sm:$0xf]
        %v1913 = vld [vmem:[%s575] sm:$0x1]
        %v1915 = vlaneseq
        %v1916 = vshrl.u32 %v1915, 7
        %v1917 = vsub.s32 0, %v1916
        %v1918 = vrot.slane %v1913, %v1917
        %v1928 = vunpack.c.l.b16 %v1905
        %v1929 = vunpack.c.l.b16 %v1906
        %v1930 = vunpack.c.l.b16 %v1907
        %v1931 = vunpack.c.l.b16 %v1908
        %v1932 = vunpack.c.l.b16 %v1909
        %v1933 = vunpack.c.l.b16 %v1910
        %v1934 = vunpack.c.l.b16 %v1911
        %v1935 = vunpack.c.l.b16 %v1912
        %v1936 = vpack.c.b16 %v1929, %v1928
        %v1937 = vpack.c.b16 %v1931, %v1930
        %v1938 = vpack.c.b16 %v1933, %v1932
        %v1939 = vpack.c.b16 %v1935, %v1934
        %vm1944 = vcmask 523264
        %v1946 = vsel %vm1944, %v1904, 0
        %1948 = vmatprep.subr.bf16.mxu0 0
        %1949 = vmatpush1.bf16.msra.mxu0 %v1936
        %1950 = vmatprep.subr.bf16.mxu0 0
        %1951 = vmatpush1.bf16.msra.mxu0 %v1937
        %1952 = vmatprep.subr.bf16.mxu0 0
        %1953 = vmatpush1.bf16.msra.mxu0 %v1938
        %1954 = vmatprep.subr.bf16.mxu0 0
        %1955 = vmatpush1.bf16.msra.mxu0 %v1939
        %1956 = vmatprep.subr.bf16.mxu0 0
        %1957 = vmatpush1.bf16.msra.mxu0 0
        %1958 = vmatprep.subr.bf16.mxu0 0
        %1959 = vmatpush1.bf16.msra.mxu0 0
        %1960 = vmatprep.subr.bf16.mxu0 0
        %1961 = vmatpush1.bf16.msra.mxu0 0
        %1962 = vmatprep.subr.bf16.mxu0 0
        %1963 = vmatpush1.bf16.msra.mxu0 0
        %1964 = vmatprep.subr.bf16.mxu0 0
        %1965 = vmatpush1.bf16.msra.mxu0 0
        %1966 = vmatprep.subr.bf16.mxu0 0
        %1967 = vmatpush1.bf16.msra.mxu0 0
        %1968 = vmatprep.subr.bf16.mxu0 0
        %1969 = vmatpush1.bf16.msra.mxu0 0
        %1970 = vmatprep.subr.bf16.mxu0 0
        %1971 = vmatpush1.bf16.msra.mxu0 0
        %1972 = vmatprep.subr.bf16.mxu0 0
        %1973 = vmatpush1.bf16.msra.mxu0 0
        %1974 = vmatprep.subr.bf16.mxu0 0
        %1975 = vmatpush1.bf16.msra.mxu0 0
        %1976 = vmatprep.subr.bf16.mxu0 0
        %1977 = vmatpush1.bf16.msra.mxu0 0
        %1978 = vmatprep.subr.bf16.mxu0 0
        %1979 = vmatpush1.bf16.msra.mxu0 0
        %1980 = vmatprep.mubr.bf16.mxu0 0
        %1981 = vmatmul.mubr.bf16.gmra.mrb[0].mxu0 %v1946
        %v1982 = vpop.f32.mrb[0].mxu0
        %v1983 = vadd.f32 %v1918, %v1982
        %v1984 = vpop.f32.mrb[0].mxu0
        %v1985 = vpop.f32.mrb[0].mxu0
        %v1986 = vadd.f32 %v1918, %v1985
        %v1987 = vpop.f32.mrb[0].mxu0
        %1988 = vdwg.mxu0
        %v1989 = vadd.f32 %v1806, %v1983
        %v1990 = vadd.f32 %v1807, %v1986
        %p1991 = scmp.lt.s32.totalorder %s30, 1
        // Predicated region
        $region77: #{tpu_custom_call.1} parent=67 // pred_check
          %p1992 = pneg %p1991
        $region78: #{tpu_custom_call.1} parent=67 // pred_check_branch
          %1994 = sbr.rel (%p1992) target = $region80
        $region79: #{tpu_custom_call.1} parent=67 // pred_region
          %1995 = vst.msk [vmem:[#allocation5] sm:$0xff] %vm603, %v1989
          %1996 = vst.msk [vmem:[#allocation5 + $0x8] sm:$0xff] %vm603, %v1990
        $region80: #{tpu_custom_call.1} parent=67 // pred_fallthru
          _
        %p1997 = scmp.eq.s32.totalorder %s30, 1
        // Predicated region
        $region81: #{tpu_custom_call.1} parent=67 // pred_check
          %p1998 = pneg %p1997
        $region82: #{tpu_custom_call.1} parent=67 // pred_check_branch
          %2000 = sbr.rel (%p1998) target = $region84
        $region83: #{tpu_custom_call.1} parent=67 // pred_region
          %v2001 = vsel %vm603, %v1989, 0.0
          %2002 = vadd.xlane.f32.xlu0 %v2001
          %v2003 = vpop.xlane.xlu0 %2002
          %v2004 = vsel %vm603, %v1990, 0.0
          %2005 = vadd.xlane.f32.xlu0 %v2004
          %v2006 = vpop.xlane.xlu0 %2005
          %v2007 = vmul.f32 %v2003, %v610
          %v2008 = vmul.f32 %v2006, %v610
          %v2009 = vsub.f32 %v1989, %v2007
          %v2010 = vsub.f32 %v1990, %v2008
          %v2011 = vmul.f32 %v2009, %v2009
          %v2012 = vmul.f32 %v2010, %v2010
          %v2013 = vsel %vm603, %v2011, 0.0
          %2014 = vadd.xlane.f32.xlu0 %v2013
          %v2015 = vpop.xlane.xlu0 %2014
          %v2016 = vsel %vm603, %v2012, 0.0
          %2017 = vadd.xlane.f32.xlu0 %v2016
          %v2018 = vpop.xlane.xlu0 %2017
          %v2019 = vmul.f32 %v2015, %v610
          %v2020 = vmul.f32 %v2018, %v610
          %v2021 = vadd.f32 %v2019, 1e-05
          %v2022 = vadd.f32 %v2020, 1e-05
          %v2023 = vrsqrt.pop %v2021
          %v2024 = vrsqrt.pop %v2022
          %v2025 = vmul.f32 %v2009, %v2023
          %v2026 = vmul.f32 %v2010, %v2024
          %v2027 = vld [vmem:[%s10] sm:$0x1]
          %v2029 = vlaneseq
          %v2030 = vshrl.u32 %v2029, 7
          %v2031 = vsub.s32 0, %v2030
          %v2032 = vrot.slane %v2027, %v2031
          %v2034 = vmul.f32 %v2025, %v2032
          %v2035 = vmul.f32 %v2026, %v2032
          %v2036 = vld [vmem:[%s11] sm:$0x1]
          %v2038 = vlaneseq
          %v2039 = vshrl.u32 %v2038, 7
          %v2040 = vsub.s32 0, %v2039
          %v2041 = vrot.slane %v2036, %v2040
          %v2043 = vadd.f32 %v2034, %v2041
          %v2044 = vadd.f32 %v2035, %v2041
          %2045 = vst.msk [vmem:[#allocation5] sm:$0xff] %vm603, %v2043
          %2046 = vst.msk [vmem:[#allocation5 + $0x8] sm:$0xff] %vm603, %v2044
        $region84: #{tpu_custom_call.1} parent=67 // pred_fallthru
          _
        // Predicated region
        $region85: #{tpu_custom_call.1} parent=67 // pred_check
          %p2047 = pneg %p357
        $region86: #{tpu_custom_call.1} parent=67 // pred_check_branch
          %2049 = sbr.rel (%p2047) target = $region88
        $region87: #{tpu_custom_call.1} parent=67 // pred_region
          %s2050 = smul.u32 2, %s29
          %s2052 = ssub.s32 256, 256
          %2053 = vsyncadd [#allocation4], %s2052
          %s2054 = smul.addr %s2050, 128
          %s2055 = scalar_lea.hbm %s12, %s2054
          %s2056 = sshll.u32 [#allocation5], 4
          %s2057 = int_to_ptr.vmem [resolvable:$true] %s2056
          %2062 = dma.vmem_to_hbm [thread:$0]  %s2057, 256, %s2055, [#allocation4], 128, 128, 8
        $region88: #{tpu_custom_call.1} parent=67 // pred_fallthru
          _
        // Predicated region
        $region89: #{tpu_custom_call.1} parent=67 // pred_check
          %p2063 = pneg %p357
        $region90: #{tpu_custom_call.1} parent=67 // pred_check_branch
          %2065 = sbr.rel (%p2063) target = $region92
        $region91: #{tpu_custom_call.1} parent=67 // pred_region
          %2066 = dma.done [#allocation4], 256
        $region92: #{tpu_custom_call.1} parent=67 // pred_fallthru
          _
      $region68: #{tpu_custom_call.1} parent=5 // pred_fallthru
        _
      %p2067 = scmp.le.s32.totalorder 2, %s20
      // Predicated region
      $region93: #{tpu_custom_call.1} parent=5 // pred_check
        %p2068 = pneg %p2067
      $region94: #{tpu_custom_call.1} parent=5 // pred_check_branch
        %2070 = sbr.rel (%p2068) target = $region96
      $region95: #{tpu_custom_call.1} parent=5 // pred_region
        %s2071 = ssub.s32 %s20, 2
      $region96: #{tpu_custom_call.1} parent=5 // pred_fallthru
        _
    $region6: #{tpu_custom_call.1} parent=1 // loop_footer
      %s24 = sadd.s32 1, %s20
    $region7: #{tpu_custom_call.1} parent=1 // loop_footer_branch
      %19 = sbr.rel target = $region3
    $region8: #{tpu_custom_call.1} parent=1 // loop_exit
      _
    %2072 = vsyncpa [#allocation3], 1
    %s2073 = scalar_lea.sflag [#allocation3], 1
    %2074 = vsyncpa %s2073, 1
    %2075 = vsyncpa [#allocation4], 1
    %s2076 = scalar_lea.sflag [#allocation4], 1
    %2077 = vsyncpa %s2076, 1

</llo_original>
